<compile_context>
chip_gen: v5e
topology: v5e:2x2
jax: 0.10.0
libtpu: 0.0.40
codegen_flags: <defaults>
</compile_context>

<pallas_src>
import functools

import jax
import jax.numpy as jnp
from jax.experimental import pallas as pl
from jax.experimental.pallas import tpu as pltpu

H1 = 512          # lin1 output width
H2 = 256          # lin2 output width
NUM_HEADS_PAD = 8 # 2 real heads (col 0 = TRA, col 1 = TRB), padded to 8 columns
BN_EPS = 1e-5


def _mlp_fused_kernel(xa_ref, xb_ref, w1a_ref, w1b_ref, b1_ref,
                      w2_ref, b2_ref, w3_ref, b3_ref, o_ref):
    # lin1 (+ folded eval-mode bn1) on the two feature halves -> relu (dropout1 = id)
    h1 = jnp.dot(xa_ref[...], w1a_ref[...], preferred_element_type=jnp.float32)
    h1 = h1 + jnp.dot(xb_ref[...], w1b_ref[...], preferred_element_type=jnp.float32)
    h1 = jnp.maximum(h1 + b1_ref[...], 0.0).astype(jnp.bfloat16)

    # lin2 (+ folded eval-mode bn2) -> relu (dropout2 = id)
    h2 = jnp.dot(h1, w2_ref[...], preferred_element_type=jnp.float32)
    h2 = jnp.maximum(h2 + b2_ref[...], 0.0).astype(jnp.bfloat16)

    # Both heads at once; w3 is (H2, 8) so the MXU gets the natural (M,K)@(K,N)
    # orientation and no transpose of h2 is needed.
    logits = jnp.dot(h2, w3_ref[...], preferred_element_type=jnp.float32)
    o_ref[...] = logits + b3_ref[...]


def _choose_tm(e_tot, *, tm_max=1024, tm_min=256):
    """Big tile to amortize per-step overhead, but >=2 tiles when possible (v7x)."""
    half = -(-max(e_tot, 1) // 2)              # ceil(e_tot / 2)
    half = -(-half // tm_min) * tm_min         # round up to a multiple of tm_min
    return max(tm_min, min(tm_max, half))


def _vmem_budget_bytes(tm, d_half):
    bf16, f32 = 2, 4
    x_io = 2 * 2 * tm * d_half * bf16                                   # 2 inputs, 2 bufs
    wgt = (2 * d_half * H1 + H1 * H2 + H2 * NUM_HEADS_PAD) * bf16       # single-buffered
    wgt += (H1 + H2 + NUM_HEADS_PAD) * f32                              # biases
    act = tm * H1 * (f32 + bf16) + tm * H2 * (f32 + bf16) + tm * NUM_HEADS_PAD * f32
    out = 2 * tm * NUM_HEADS_PAD * f32
    footprint = x_io + wgt + act + out
    return int(min(56 * 1024 * 1024, max(32 * 1024 * 1024, 2 * footprint)))


def mlp_fused(x_a, x_b, params, *, tm):
    """x_a, x_b: [E_pad, H] bf16 halves of the edge feature -> logits [E_pad, 8] f32."""
    E, dh = x_a.shape
    assert E % tm == 0, "edge axis must be padded to a multiple of tm"
    D = 2 * dh

    def const(shape):
        # Grid-invariant operand: constant index_map, single VMEM buffer.
        return pl.BlockSpec(shape, lambda i: (0, 0), pipeline_mode=pl.Buffered(1))

    flops = 2 * E * (D * H1 + H1 * H2 + H2 * NUM_HEADS_PAD)
    bytes_accessed = (E * D * 2                                   # bf16 activations in
                      + E * NUM_HEADS_PAD * 4                     # f32 logits out
                      + (D * H1 + H1 * H2 + H2 * NUM_HEADS_PAD) * 2
                      + (H1 + H2 + NUM_HEADS_PAD) * 4)

    return pl.pallas_call(
        _mlp_fused_kernel,
        out_shape=jax.ShapeDtypeStruct((E, NUM_HEADS_PAD), jnp.float32),
        grid_spec=pltpu.PrefetchScalarGridSpec(
            num_scalar_prefetch=0,
            grid=(E // tm,),
            in_specs=[
                pl.BlockSpec((tm, dh), lambda i: (i, 0)),   # x first half tile
                pl.BlockSpec((tm, dh), lambda i: (i, 0)),   # x second half tile
                const((dh, H1)), const((dh, H1)), const((1, H1)),   # lin1 (bn1 folded)
                const((H1, H2)), const((1, H2)),                    # lin2 (bn2 folded)
                const((H2, NUM_HEADS_PAD)), const((1, NUM_HEADS_PAD)),  # both heads
            ],
            out_specs=pl.BlockSpec((tm, NUM_HEADS_PAD), lambda i: (i, 0)),
        ),
        compiler_params=pltpu.CompilerParams(
            dimension_semantics=("parallel",),
            vmem_limit_bytes=_vmem_budget_bytes(tm, dh)),
        cost_estimate=pl.CostEstimate(flops=flops, transcendentals=0,
                                      bytes_accessed=bytes_accessed),
    )(x_a, x_b, params['w1a'], params['w1b'], params['b1'],
      params['w2'], params['b2'], params['w3'], params['b3'])


def init_params(key, hidden_channels):
    """Parameters matching the PyTorch module (eval-mode BN folded, bf16 weights)."""
    d_in = 2 * hidden_channels
    ks = jax.random.split(key, 4)

    def lin(k, fan_in, fan_out):
        bound = 1.0 / jnp.sqrt(fan_in)
        kw, kb = jax.random.split(k)
        w = jax.random.uniform(kw, (fan_in, fan_out), jnp.float32, -bound, bound)
        b = jax.random.uniform(kb, (fan_out,), jnp.float32, -bound, bound)
        return w, b

    w1, b1 = lin(ks[0], d_in, H1)
    w2, b2 = lin(ks[1], H1, H2)
    w3a, b3a = lin(ks[2], H2, 1)
    w3b, b3b = lin(ks[3], H2, 1)

    # BatchNorm1d eval-mode stats (gamma=1, beta=0, mean=0, var=1).  Plug real
    # running stats / affine params in here when loading a trained checkpoint.
    def bn_scale_shift(dim):
        gamma = jnp.ones((dim,), jnp.float32)
        beta = jnp.zeros((dim,), jnp.float32)
        mean = jnp.zeros((dim,), jnp.float32)
        var = jnp.ones((dim,), jnp.float32)
        scale = gamma / jnp.sqrt(var + BN_EPS)
        shift = beta - mean * scale
        return scale, shift

    s1, t1 = bn_scale_shift(H1)
    s2, t2 = bn_scale_shift(H2)

    # Fold BN into the linears: (x@w + b)*s + t == x@(w*s) + (b*s + t).
    w1f = w1 * s1[None, :]
    w1a = w1f[:hidden_channels].astype(jnp.bfloat16)     # multiplies the cdr3b half
    w1b = w1f[hidden_channels:].astype(jnp.bfloat16)     # multiplies the peptide half
    b1f = (b1 * s1 + t1).reshape(1, H1)
    w2f = (w2 * s2[None, :]).astype(jnp.bfloat16)
    b2f = (b2 * s2 + t2).reshape(1, H2)

    # Stack + pad the heads to 8 columns: col 0 = TRA head, col 1 = TRB head.
    w3 = jnp.zeros((H2, NUM_HEADS_PAD), jnp.float32)
    w3 = w3.at[:, 0].set(w3a[:, 0]).at[:, 1].set(w3b[:, 0]).astype(jnp.bfloat16)
    b3 = jnp.zeros((1, NUM_HEADS_PAD), jnp.float32)
    b3 = b3.at[0, 0].set(b3a[0]).at[0, 1].set(b3b[0])

    return dict(w1a=w1a, w1b=w1b, b1=b1f, w2=w2f, b2=b2f, w3=w3, b3=b3)


def mlp_forward(params, z_dict, edge_index_a, edge_index_b, *, tm_max=1024):
    """Mirrors MLP.forward (eval mode): gather in JAX, fused MLP in Pallas."""
    # TODO(synk): training-mode BatchNorm batch statistics and stochastic Dropout are
    # not reproduced (inference semantics: running stats folded, dropout = identity).
    # TODO(synk): an in-kernel scalar-prefetch row gather (pl.ANY tables + per-row
    # make_async_copy) would remove the remaining gather writes, but per-row ~2 KiB
    # DMA descriptor issue cost would exceed the tile's MXU time, so the gather stays
    # in XLA — on bf16 tables, with no feature-concat / pad pass over activations.
    cdr3b = z_dict['cdr3b'].astype(jnp.bfloat16)
    tra_pep = z_dict['tra_peptide'].astype(jnp.bfloat16)
    trb_pep = z_dict['trb_peptide'].astype(jnp.bfloat16)
    n_tra = tra_pep.shape[0]
    # Table-sized (not edge-sized) concat so one gather serves both edge batches.
    pep = jnp.concatenate([tra_pep, trb_pep], axis=0)

    e_a = edge_index_a.shape[1]
    e_b = edge_index_b.shape[1]
    e_tot = e_a + e_b
    tm = _choose_tm(e_tot, tm_max=tm_max)
    e_pad = -(-e_tot // tm) * tm

    idx_first = jnp.concatenate([edge_index_a[0], edge_index_b[0]])
    idx_second = jnp.concatenate([edge_index_a[1], edge_index_b[1] + n_tra])
    pad = e_pad - e_tot
    if pad:  # pad the (tiny) index arrays, never the [E, H] activations
        idx_first = jnp.pad(idx_first, (0, pad))
        idx_second = jnp.pad(idx_second, (0, pad))

    x_a = cdr3b[idx_first]     # (E_pad, H) bf16
    x_b = pep[idx_second]      # (E_pad, H) bf16

    logits = mlp_fused(x_a, x_b, params, tm=tm)
    out_tra = logits[:e_a, 0:1]
    out_trb = logits[e_a:e_tot, 1:2]
    return out_tra, out_trb


def _reference_forward(params, z_dict, edge_index_a, edge_index_b):
    """Pure-JAX reference with the same numerics (bf16 weights, f32 accumulation)."""
    hp = jax.lax.Precision.HIGHEST
    w1 = jnp.concatenate([params['w1a'], params['w1b']], axis=0).astype(jnp.float32)

    def path(x, col):
        x = x.astype(jnp.bfloat16).astype(jnp.float32)
        h1 = jnp.maximum(jnp.dot(x, w1, precision=hp) + params['b1'], 0.0)
        h1 = h1.astype(jnp.bfloat16).astype(jnp.float32)
        h2 = jnp.maximum(
            jnp.dot(h1, params['w2'].astype(jnp.float32), precision=hp) + params['b2'],
            0.0)
        h2 = h2.astype(jnp.bfloat16).astype(jnp.float32)
        lg = jnp.dot(h2, params['w3'].astype(jnp.float32), precision=hp) + params['b3']
        return lg[:, col:col + 1]

    x_tra = jnp.concatenate([z_dict['cdr3b'][edge_index_a[0]],
                             z_dict['tra_peptide'][edge_index_a[1]]], axis=1)
    x_trb = jnp.concatenate([z_dict['cdr3b'][edge_index_b[0]],
                             z_dict['trb_peptide'][edge_index_b[1]]], axis=1)
    return path(x_tra, 0), path(x_trb, 1)


if __name__ == "__main__":
    hidden_channels = 64       # small stand-in for the default 1024 (2H = 128 lanes)
    n_cdr3b, n_tra, n_trb = 10, 6, 6
    num_edges_a, num_edges_b = 16, 12

    key = jax.random.PRNGKey(0)
    k_par, k1, k2, k3, ka0, ka1, kb0, kb1 = jax.random.split(key, 8)

    params = init_params(k_par, hidden_channels)

    z_dict = {
        'cdr3b': jax.random.normal(k1, (n_cdr3b, hidden_channels), jnp.float32),
        'tra_peptide': jax.random.normal(k2, (n_tra, hidden_channels), jnp.float32),
        'trb_peptide': jax.random.normal(k3, (n_trb, hidden_channels), jnp.float32),
    }
    edge_index_a = jnp.stack([
        jax.random.randint(ka0, (num_edges_a,), 0, n_cdr3b),
        jax.random.randint(ka1, (num_edges_a,), 0, n_tra),
    ])
    edge_index_b = jnp.stack([
        jax.random.randint(kb0, (num_edges_b,), 0, n_cdr3b),
        jax.random.randint(kb1, (num_edges_b,), 0, n_trb),
    ])

    fwd = jax.jit(functools.partial(mlp_forward, params))
    out_tra, out_trb = fwd(z_dict, edge_index_a, edge_index_b)
    jax.block_until_ready((out_tra, out_trb))

    ref_tra, ref_trb = _reference_forward(params, z_dict, edge_index_a, edge_index_b)

    assert out_tra.shape == (num_edges_a, 1) and out_trb.shape == (num_edges_b, 1)
    assert jnp.all(jnp.isfinite(out_tra)) and jnp.all(jnp.isfinite(out_trb))
    assert jnp.allclose(out_tra, ref_tra, atol=5e-2, rtol=5e-2)
    assert jnp.allclose(out_trb, ref_trb, atol=5e-2, rtol=5e-2)
    print("KERNEL_OK")
</pallas_src>

<mosaic_0001>
module attributes {stable_mosaic.version = 11 : i64} {
  func.func @_mlp_fused_kernel(%arg0: i32, %arg1: memref<256x64xbf16, #tpu.memory_space<vmem>>, %arg2: memref<256x64xbf16, #tpu.memory_space<vmem>>, %arg3: memref<64x512xbf16, #tpu.memory_space<vmem>>, %arg4: memref<64x512xbf16, #tpu.memory_space<vmem>>, %arg5: memref<1x512xf32, #tpu.memory_space<vmem>>, %arg6: memref<512x256xbf16, #tpu.memory_space<vmem>>, %arg7: memref<1x256xf32, #tpu.memory_space<vmem>>, %arg8: memref<256x8xbf16, #tpu.memory_space<vmem>>, %arg9: memref<1x8xf32, #tpu.memory_space<vmem>>, %arg10: memref<256x8xf32, #tpu.memory_space<vmem>>) attributes {dimension_semantics = [#tpu.dimension_semantics<parallel>], iteration_bounds = array<i64: 1>, scalar_prefetch = 0 : i64, scratch_operands = 0 : i64, tpu.core_type = #tpu.core_type<tc>, window_params = [{transform_indices = @transform_0, window_bounds = array<i64: 256, 64>}, {transform_indices = @transform_1, window_bounds = array<i64: 256, 64>}, {pipeline_mode = #tpu.pipeline_mode<synchronous>, transform_indices = @transform_2, window_bounds = array<i64: 64, 512>}, {pipeline_mode = #tpu.pipeline_mode<synchronous>, transform_indices = @transform_3, window_bounds = array<i64: 64, 512>}, {pipeline_mode = #tpu.pipeline_mode<synchronous>, transform_indices = @transform_4, window_bounds = array<i64: 1, 512>}, {pipeline_mode = #tpu.pipeline_mode<synchronous>, transform_indices = @transform_5, window_bounds = array<i64: 512, 256>}, {pipeline_mode = #tpu.pipeline_mode<synchronous>, transform_indices = @transform_6, window_bounds = array<i64: 1, 256>}, {pipeline_mode = #tpu.pipeline_mode<synchronous>, transform_indices = @transform_7, window_bounds = array<i64: 256, 8>}, {pipeline_mode = #tpu.pipeline_mode<synchronous>, transform_indices = @transform_8, window_bounds = array<i64: 1, 8>}, {transform_indices = @transform_9, window_bounds = array<i64: 256, 8>}]} {
    %c0 = arith.constant 0 : index
    %c0_0 = arith.constant 0 : index
    %0 = vector.load %arg1[%c0, %c0_0] : memref<256x64xbf16, #tpu.memory_space<vmem>>, vector<256x64xbf16>
    %c0_1 = arith.constant 0 : index
    %c0_2 = arith.constant 0 : index
    %1 = vector.load %arg3[%c0_1, %c0_2] : memref<64x512xbf16, #tpu.memory_space<vmem>>, vector<64x512xbf16>
    %cst = arith.constant dense<0.000000e+00> : vector<256x512xf32>
    %2 = tpu.matmul %0, %1, %cst {dimension_numbers = #tpu.dot_dimension_numbers<[1], [0], [0], [1], [0, 0, 1, 1], [], []>} : vector<256x64xbf16>, vector<64x512xbf16>, vector<256x512xf32> -> vector<256x512xf32>
    %c0_3 = arith.constant 0 : index
    %c0_4 = arith.constant 0 : index
    %3 = vector.load %arg2[%c0_3, %c0_4] : memref<256x64xbf16, #tpu.memory_space<vmem>>, vector<256x64xbf16>
    %c0_5 = arith.constant 0 : index
    %c0_6 = arith.constant 0 : index
    %4 = vector.load %arg4[%c0_5, %c0_6] : memref<64x512xbf16, #tpu.memory_space<vmem>>, vector<64x512xbf16>
    %cst_7 = arith.constant dense<0.000000e+00> : vector<256x512xf32>
    %5 = tpu.matmul %3, %4, %cst_7 {dimension_numbers = #tpu.dot_dimension_numbers<[1], [0], [0], [1], [0, 0, 1, 1], [], []>} : vector<256x64xbf16>, vector<64x512xbf16>, vector<256x512xf32> -> vector<256x512xf32>
    %6 = arith.addf %2, %5 : vector<256x512xf32>
    %c0_8 = arith.constant 0 : index
    %c0_9 = arith.constant 0 : index
    %7 = vector.load %arg5[%c0_8, %c0_9] : memref<1x512xf32, #tpu.memory_space<vmem>>, vector<1x512xf32>
    %8 = vector.broadcast %7 : vector<1x512xf32> to vector<256x512xf32>
    %9 = arith.addf %6, %8 : vector<256x512xf32>
    %cst_10 = arith.constant 0.000000e+00 : f32
    %10 = vector.broadcast %cst_10 : f32 to vector<256x512xf32>
    %11 = arith.maximumf %9, %10 : vector<256x512xf32>
    %12 = arith.truncf %11 : vector<256x512xf32> to vector<256x512xbf16>
    %c0_11 = arith.constant 0 : index
    %c0_12 = arith.constant 0 : index
    %13 = vector.load %arg6[%c0_11, %c0_12] : memref<512x256xbf16, #tpu.memory_space<vmem>>, vector<512x256xbf16>
    %cst_13 = arith.constant dense<0.000000e+00> : vector<256x256xf32>
    %14 = tpu.matmul %12, %13, %cst_13 {dimension_numbers = #tpu.dot_dimension_numbers<[1], [0], [0], [1], [0, 0, 1, 1], [], []>} : vector<256x512xbf16>, vector<512x256xbf16>, vector<256x256xf32> -> vector<256x256xf32>
    %c0_14 = arith.constant 0 : index
    %c0_15 = arith.constant 0 : index
    %15 = vector.load %arg7[%c0_14, %c0_15] : memref<1x256xf32, #tpu.memory_space<vmem>>, vector<1x256xf32>
    %16 = vector.broadcast %15 : vector<1x256xf32> to vector<256x256xf32>
    %17 = arith.addf %14, %16 : vector<256x256xf32>
    %cst_16 = arith.constant 0.000000e+00 : f32
    %18 = vector.broadcast %cst_16 : f32 to vector<256x256xf32>
    %19 = arith.maximumf %17, %18 : vector<256x256xf32>
    %20 = arith.truncf %19 : vector<256x256xf32> to vector<256x256xbf16>
    %c0_17 = arith.constant 0 : index
    %c0_18 = arith.constant 0 : index
    %21 = vector.load %arg8[%c0_17, %c0_18] : memref<256x8xbf16, #tpu.memory_space<vmem>>, vector<256x8xbf16>
    %cst_19 = arith.constant dense<0.000000e+00> : vector<256x8xf32>
    %22 = tpu.matmul %20, %21, %cst_19 {dimension_numbers = #tpu.dot_dimension_numbers<[1], [0], [0], [1], [0, 0, 1, 1], [], []>} : vector<256x256xbf16>, vector<256x8xbf16>, vector<256x8xf32> -> vector<256x8xf32>
    %c0_20 = arith.constant 0 : index
    %c0_21 = arith.constant 0 : index
    %23 = vector.load %arg9[%c0_20, %c0_21] : memref<1x8xf32, #tpu.memory_space<vmem>>, vector<1x8xf32>
    %24 = vector.broadcast %23 : vector<1x8xf32> to vector<256x8xf32>
    %25 = arith.addf %22, %24 : vector<256x8xf32>
    %c0_22 = arith.constant 0 : index
    %c0_23 = arith.constant 0 : index
    %26 = vector.load %arg10[%c0_22, %c0_23] : memref<256x8xf32, #tpu.memory_space<vmem>>, vector<256x8xf32>
    tpu.vector_store %arg10[%c0_22, %c0_23], %25 {strides = array<i32>} : memref<256x8xf32, #tpu.memory_space<vmem>>, vector<256x8xf32>,
    return
  }
  func.func @transform_0(%arg0: i32) -> (i32, i32) {
    %c0_i32 = arith.constant 0 : i32
    %c0_i32_0 = arith.constant 0 : i32
    return %arg0, %c0_i32 : i32, i32
  }
  func.func @transform_1(%arg0: i32) -> (i32, i32) {
    %c0_i32 = arith.constant 0 : i32
    %c0_i32_0 = arith.constant 0 : i32
    return %arg0, %c0_i32 : i32, i32
  }
  func.func @transform_2(%arg0: i32) -> (i32, i32) {
    %c0_i32 = arith.constant 0 : i32
    %c0_i32_0 = arith.constant 0 : i32
    %c0_i32_1 = arith.constant 0 : i32
    return %c0_i32, %c0_i32_0 : i32, i32
  }
  func.func @transform_3(%arg0: i32) -> (i32, i32) {
    %c0_i32 = arith.constant 0 : i32
    %c0_i32_0 = arith.constant 0 : i32
    %c0_i32_1 = arith.constant 0 : i32
    return %c0_i32, %c0_i32_0 : i32, i32
  }
  func.func @transform_4(%arg0: i32) -> (i32, i32) {
    %c0_i32 = arith.constant 0 : i32
    %c0_i32_0 = arith.constant 0 : i32
    %c0_i32_1 = arith.constant 0 : i32
    return %c0_i32, %c0_i32_0 : i32, i32
  }
  func.func @transform_5(%arg0: i32) -> (i32, i32) {
    %c0_i32 = arith.constant 0 : i32
    %c0_i32_0 = arith.constant 0 : i32
    %c0_i32_1 = arith.constant 0 : i32
    return %c0_i32, %c0_i32_0 : i32, i32
  }
  func.func @transform_6(%arg0: i32) -> (i32, i32) {
    %c0_i32 = arith.constant 0 : i32
    %c0_i32_0 = arith.constant 0 : i32
    %c0_i32_1 = arith.constant 0 : i32
    return %c0_i32, %c0_i32_0 : i32, i32
  }
  func.func @transform_7(%arg0: i32) -> (i32, i32) {
    %c0_i32 = arith.constant 0 : i32
    %c0_i32_0 = arith.constant 0 : i32
    %c0_i32_1 = arith.constant 0 : i32
    return %c0_i32, %c0_i32_0 : i32, i32
  }
  func.func @transform_8(%arg0: i32) -> (i32, i32) {
    %c0_i32 = arith.constant 0 : i32
    %c0_i32_0 = arith.constant 0 : i32
    %c0_i32_1 = arith.constant 0 : i32
    return %c0_i32, %c0_i32_0 : i32, i32
  }
  func.func @transform_9(%arg0: i32) -> (i32, i32) {
    %c0_i32 = arith.constant 0 : i32
    %c0_i32_0 = arith.constant 0 : i32
    return %arg0, %c0_i32 : i32, i32
  }
}

</mosaic_0001>

<llo_original>
// kernel: mlp_forward.1
$region0: #{mlp_forward.1}
  #allocation0 [shape = 'u32[]', space=smem, size = 0x4, offset = 0x4, fixed_abs, tag = 'smem constant byte address 0x4 - core index']
  #allocation1 [shape = 'u32[72,128]{1,0:T(1,128)}', space=vmem, size = 0x9000, scoped, tag = 'internal scratch']
  %s0 = inlined_call_operand.vmem [shape: bf16[256,64], index: 0, kind: input, shape index: {}]
  %s1 = inlined_call_operand.vmem [shape: bf16[256,64], index: 1, kind: input, shape index: {}]
  %s2 = inlined_call_operand.vmem [shape: bf16[64,512], index: 2, kind: input, shape index: {}]
  %s3 = inlined_call_operand.vmem [shape: bf16[64,512], index: 3, kind: input, shape index: {}]
  %s4 = inlined_call_operand.vmem [shape: f32[1,512], index: 4, kind: input, shape index: {}]
  %s5 = inlined_call_operand.vmem [shape: bf16[512,256], index: 5, kind: input, shape index: {}]
  %s6 = inlined_call_operand.vmem [shape: f32[1,256], index: 6, kind: input, shape index: {}]
  %s7 = inlined_call_operand.vmem [shape: bf16[256,8], index: 7, kind: input, shape index: {}]
  %s8 = inlined_call_operand.vmem [shape: f32[1,8], index: 8, kind: input, shape index: {}]
  %s9 = inlined_call_operand.vmem [shape: f32[256,8], index: 9, kind: output, shape index: {}]
  %s10 = sld [smem:[#allocation0]]
  $region46: #{mlp_forward.1} parent=0
    _
  %s12 = ssub.s32 1, %s10
  %s13 = scalar_select 0, %s12, %s10
  // Predicated region
  $region2: #{mlp_forward.1} parent=0 // pred_check
    _
  $region3: #{mlp_forward.1} parent=0 // pred_check_branch
    %15 = sbr.rel (0) target = $region5
  $region4: #{mlp_forward.1} parent=0 // pred_region
    _
  $region5: #{mlp_forward.1} parent=0 // pred_fallthru
    _
  // Predicated region
  $region6: #{mlp_forward.1} parent=0 // pred_check
    _
  $region7: #{mlp_forward.1} parent=0 // pred_check_branch
    %17 = sbr.rel (0) target = $region9
  $region8: #{mlp_forward.1} parent=0 // pred_region
    _
  $region9: #{mlp_forward.1} parent=0 // pred_fallthru
    _
  // Predicated region
  $region10: #{mlp_forward.1} parent=0 // pred_check
    _
  $region11: #{mlp_forward.1} parent=0 // pred_check_branch
    %19 = sbr.rel (0) target = $region13
  $region12: #{mlp_forward.1} parent=0 // pred_region
    _
  $region13: #{mlp_forward.1} parent=0 // pred_fallthru
    _
  // Predicated region
  $region14: #{mlp_forward.1} parent=0 // pred_check
    _
  $region15: #{mlp_forward.1} parent=0 // pred_check_branch
    %21 = sbr.rel (0) target = $region17
  $region16: #{mlp_forward.1} parent=0 // pred_region
    _
  $region17: #{mlp_forward.1} parent=0 // pred_fallthru
    _
  // Predicated region
  $region18: #{mlp_forward.1} parent=0 // pred_check
    _
  $region19: #{mlp_forward.1} parent=0 // pred_check_branch
    %23 = sbr.rel (0) target = $region21
  $region20: #{mlp_forward.1} parent=0 // pred_region
    _
  $region21: #{mlp_forward.1} parent=0 // pred_fallthru
    _
  // Predicated region
  $region22: #{mlp_forward.1} parent=0 // pred_check
    _
  $region23: #{mlp_forward.1} parent=0 // pred_check_branch
    %25 = sbr.rel (0) target = $region25
  $region24: #{mlp_forward.1} parent=0 // pred_region
    _
  $region25: #{mlp_forward.1} parent=0 // pred_fallthru
    _
  // Predicated region
  $region26: #{mlp_forward.1} parent=0 // pred_check
    _
  $region27: #{mlp_forward.1} parent=0 // pred_check_branch
    %27 = sbr.rel (0) target = $region29
  $region28: #{mlp_forward.1} parent=0 // pred_region
    _
  $region29: #{mlp_forward.1} parent=0 // pred_fallthru
    _
  // Predicated region
  $region30: #{mlp_forward.1} parent=0 // pred_check
    _
  $region31: #{mlp_forward.1} parent=0 // pred_check_branch
    %29 = sbr.rel (0) target = $region33
  $region32: #{mlp_forward.1} parent=0 // pred_region
    _
  $region33: #{mlp_forward.1} parent=0 // pred_fallthru
    _
  // Predicated region
  $region34: #{mlp_forward.1} parent=0 // pred_check
    _
  $region35: #{mlp_forward.1} parent=0 // pred_check_branch
    %31 = sbr.rel (0) target = $region37
  $region36: #{mlp_forward.1} parent=0 // pred_region
    _
  $region37: #{mlp_forward.1} parent=0 // pred_fallthru
    _
  %v33 = vld [vmem:[%s0] sm:$0xf]
  %v34 = vld [vmem:[%s0 + $0x4] sm:$0xf]
  %v35 = vld [vmem:[%s0 + $0x8] sm:$0xf]
  %v36 = vld [vmem:[%s0 + $0xc] sm:$0xf]
  %v37 = vld [vmem:[%s0 + $0x10] sm:$0xf]
  %v38 = vld [vmem:[%s0 + $0x14] sm:$0xf]
  %v39 = vld [vmem:[%s0 + $0x18] sm:$0xf]
  %v40 = vld [vmem:[%s0 + $0x1c] sm:$0xf]
  %v41 = vld [vmem:[%s0 + $0x20] sm:$0xf]
  %v42 = vld [vmem:[%s0 + $0x24] sm:$0xf]
  %v43 = vld [vmem:[%s0 + $0x28] sm:$0xf]
  %v44 = vld [vmem:[%s0 + $0x2c] sm:$0xf]
  %v45 = vld [vmem:[%s0 + $0x30] sm:$0xf]
  %v46 = vld [vmem:[%s0 + $0x34] sm:$0xf]
  %v47 = vld [vmem:[%s0 + $0x38] sm:$0xf]
  %v48 = vld [vmem:[%s0 + $0x3c] sm:$0xf]
  %v49 = vld [vmem:[%s0 + $0x40] sm:$0xf]
  %v50 = vld [vmem:[%s0 + $0x44] sm:$0xf]
  %v51 = vld [vmem:[%s0 + $0x48] sm:$0xf]
  %v52 = vld [vmem:[%s0 + $0x4c] sm:$0xf]
  %v53 = vld [vmem:[%s0 + $0x50] sm:$0xf]
  %v54 = vld [vmem:[%s0 + $0x54] sm:$0xf]
  %v55 = vld [vmem:[%s0 + $0x58] sm:$0xf]
  %v56 = vld [vmem:[%s0 + $0x5c] sm:$0xf]
  %v57 = vld [vmem:[%s0 + $0x60] sm:$0xf]
  %v58 = vld [vmem:[%s0 + $0x64] sm:$0xf]
  %v59 = vld [vmem:[%s0 + $0x68] sm:$0xf]
  %v60 = vld [vmem:[%s0 + $0x6c] sm:$0xf]
  %v61 = vld [vmem:[%s0 + $0x70] sm:$0xf]
  %v62 = vld [vmem:[%s0 + $0x74] sm:$0xf]
  %v63 = vld [vmem:[%s0 + $0x78] sm:$0xf]
  %v64 = vld [vmem:[%s0 + $0x7c] sm:$0xf]
  %v65 = vld [vmem:[%s2] sm:$0xff]
  %v66 = vld [vmem:[%s2 + $0x8] sm:$0xff]
  %v67 = vld [vmem:[%s2 + $0x10] sm:$0xff]
  %v68 = vld [vmem:[%s2 + $0x18] sm:$0xff]
  %v69 = vld [vmem:[%s2 + $0x20] sm:$0xff]
  %v70 = vld [vmem:[%s2 + $0x28] sm:$0xff]
  %v71 = vld [vmem:[%s2 + $0x30] sm:$0xff]
  %v72 = vld [vmem:[%s2 + $0x38] sm:$0xff]
  %v73 = vld [vmem:[%s2 + $0x40] sm:$0xff]
  %v74 = vld [vmem:[%s2 + $0x48] sm:$0xff]
  %v75 = vld [vmem:[%s2 + $0x50] sm:$0xff]
  %v76 = vld [vmem:[%s2 + $0x58] sm:$0xff]
  %v77 = vld [vmem:[%s2 + $0x60] sm:$0xff]
  %v78 = vld [vmem:[%s2 + $0x68] sm:$0xff]
  %v79 = vld [vmem:[%s2 + $0x70] sm:$0xff]
  %v80 = vld [vmem:[%s2 + $0x78] sm:$0xff]
  %v81 = vld [vmem:[%s1] sm:$0xf]
  %v82 = vld [vmem:[%s1 + $0x4] sm:$0xf]
  %v83 = vld [vmem:[%s1 + $0x8] sm:$0xf]
  %v84 = vld [vmem:[%s1 + $0xc] sm:$0xf]
  %v85 = vld [vmem:[%s1 + $0x10] sm:$0xf]
  %v86 = vld [vmem:[%s1 + $0x14] sm:$0xf]
  %v87 = vld [vmem:[%s1 + $0x18] sm:$0xf]
  %v88 = vld [vmem:[%s1 + $0x1c] sm:$0xf]
  %v89 = vld [vmem:[%s1 + $0x20] sm:$0xf]
  %v90 = vld [vmem:[%s1 + $0x24] sm:$0xf]
  %v91 = vld [vmem:[%s1 + $0x28] sm:$0xf]
  %v92 = vld [vmem:[%s1 + $0x2c] sm:$0xf]
  %v93 = vld [vmem:[%s1 + $0x30] sm:$0xf]
  %v94 = vld [vmem:[%s1 + $0x34] sm:$0xf]
  %v95 = vld [vmem:[%s1 + $0x38] sm:$0xf]
  %v96 = vld [vmem:[%s1 + $0x3c] sm:$0xf]
  %v97 = vld [vmem:[%s1 + $0x40] sm:$0xf]
  %v98 = vld [vmem:[%s1 + $0x44] sm:$0xf]
  %v99 = vld [vmem:[%s1 + $0x48] sm:$0xf]
  %v100 = vld [vmem:[%s1 + $0x4c] sm:$0xf]
  %v101 = vld [vmem:[%s1 + $0x50] sm:$0xf]
  %v102 = vld [vmem:[%s1 + $0x54] sm:$0xf]
  %v103 = vld [vmem:[%s1 + $0x58] sm:$0xf]
  %v104 = vld [vmem:[%s1 + $0x5c] sm:$0xf]
  %v105 = vld [vmem:[%s1 + $0x60] sm:$0xf]
  %v106 = vld [vmem:[%s1 + $0x64] sm:$0xf]
  %v107 = vld [vmem:[%s1 + $0x68] sm:$0xf]
  %v108 = vld [vmem:[%s1 + $0x6c] sm:$0xf]
  %v109 = vld [vmem:[%s1 + $0x70] sm:$0xf]
  %v110 = vld [vmem:[%s1 + $0x74] sm:$0xf]
  %v111 = vld [vmem:[%s1 + $0x78] sm:$0xf]
  %v112 = vld [vmem:[%s1 + $0x7c] sm:$0xf]
  %v113 = vld [vmem:[%s3] sm:$0xff]
  %v114 = vld [vmem:[%s3 + $0x8] sm:$0xff]
  %v115 = vld [vmem:[%s3 + $0x10] sm:$0xff]
  %v116 = vld [vmem:[%s3 + $0x18] sm:$0xff]
  %v117 = vld [vmem:[%s3 + $0x20] sm:$0xff]
  %v118 = vld [vmem:[%s3 + $0x28] sm:$0xff]
  %v119 = vld [vmem:[%s3 + $0x30] sm:$0xff]
  %v120 = vld [vmem:[%s3 + $0x38] sm:$0xff]
  %v121 = vld [vmem:[%s3 + $0x40] sm:$0xff]
  %v122 = vld [vmem:[%s3 + $0x48] sm:$0xff]
  %v123 = vld [vmem:[%s3 + $0x50] sm:$0xff]
  %v124 = vld [vmem:[%s3 + $0x58] sm:$0xff]
  %v125 = vld [vmem:[%s3 + $0x60] sm:$0xff]
  %v126 = vld [vmem:[%s3 + $0x68] sm:$0xff]
  %v127 = vld [vmem:[%s3 + $0x70] sm:$0xff]
  %v128 = vld [vmem:[%s3 + $0x78] sm:$0xff]
  %v161 = vunpack.c.l.b16 %v81
  %v162 = vunpack.c.l.b16 %v82
  %v163 = vunpack.c.l.b16 %v83
  %v164 = vunpack.c.l.b16 %v84
  %v165 = vunpack.c.l.b16 %v85
  %v166 = vunpack.c.l.b16 %v86
  %v167 = vunpack.c.l.b16 %v87
  %v168 = vunpack.c.l.b16 %v88
  %v169 = vunpack.c.l.b16 %v89
  %v170 = vunpack.c.l.b16 %v90
  %v171 = vunpack.c.l.b16 %v91
  %v172 = vunpack.c.l.b16 %v92
  %v173 = vunpack.c.l.b16 %v93
  %v174 = vunpack.c.l.b16 %v94
  %v175 = vunpack.c.l.b16 %v95
  %v176 = vunpack.c.l.b16 %v96
  %v177 = vunpack.c.l.b16 %v97
  %v178 = vunpack.c.l.b16 %v98
  %v179 = vunpack.c.l.b16 %v99
  %v180 = vunpack.c.l.b16 %v100
  %v181 = vunpack.c.l.b16 %v101
  %v182 = vunpack.c.l.b16 %v102
  %v183 = vunpack.c.l.b16 %v103
  %v184 = vunpack.c.l.b16 %v104
  %v185 = vunpack.c.l.b16 %v105
  %v186 = vunpack.c.l.b16 %v106
  %v187 = vunpack.c.l.b16 %v107
  %v188 = vunpack.c.l.b16 %v108
  %v189 = vunpack.c.l.b16 %v109
  %v190 = vunpack.c.l.b16 %v110
  %v191 = vunpack.c.l.b16 %v111
  %v192 = vunpack.c.l.b16 %v112
  %v193 = vpack.c.b16 %v162, %v161
  %v194 = vpack.c.b16 %v164, %v163
  %v195 = vpack.c.b16 %v166, %v165
  %v196 = vpack.c.b16 %v168, %v167
  %v197 = vpack.c.b16 %v170, %v169
  %v198 = vpack.c.b16 %v172, %v171
  %v199 = vpack.c.b16 %v174, %v173
  %v200 = vpack.c.b16 %v176, %v175
  %v201 = vpack.c.b16 %v178, %v177
  %v202 = vpack.c.b16 %v180, %v179
  %v203 = vpack.c.b16 %v182, %v181
  %v204 = vpack.c.b16 %v184, %v183
  %v205 = vpack.c.b16 %v186, %v185
  %v206 = vpack.c.b16 %v188, %v187
  %v207 = vpack.c.b16 %v190, %v189
  %v208 = vpack.c.b16 %v192, %v191
  %v225 = vunpack.c.l.b16 %v113
  %v226 = vunpack.c.h.b16 %v113
  %v227 = vunpack.c.l.b16 %v114
  %v228 = vunpack.c.h.b16 %v114
  %v229 = vunpack.c.l.b16 %v115
  %v230 = vunpack.c.h.b16 %v115
  %v231 = vunpack.c.l.b16 %v116
  %v232 = vunpack.c.h.b16 %v116
  %v233 = vunpack.c.l.b16 %v117
  %v234 = vunpack.c.h.b16 %v117
  %v235 = vunpack.c.l.b16 %v118
  %v236 = vunpack.c.h.b16 %v118
  %v237 = vunpack.c.l.b16 %v119
  %v238 = vunpack.c.h.b16 %v119
  %v239 = vunpack.c.l.b16 %v120
  %v240 = vunpack.c.h.b16 %v120
  %v241 = vunpack.c.l.b16 %v121
  %v242 = vunpack.c.h.b16 %v121
  %v243 = vunpack.c.l.b16 %v122
  %v244 = vunpack.c.h.b16 %v122
  %v245 = vunpack.c.l.b16 %v123
  %v246 = vunpack.c.h.b16 %v123
  %v247 = vunpack.c.l.b16 %v124
  %v248 = vunpack.c.h.b16 %v124
  %v249 = vunpack.c.l.b16 %v125
  %v250 = vunpack.c.h.b16 %v125
  %v251 = vunpack.c.l.b16 %v126
  %v252 = vunpack.c.h.b16 %v126
  %v253 = vunpack.c.l.b16 %v127
  %v254 = vunpack.c.h.b16 %v127
  %v255 = vunpack.c.l.b16 %v128
  %v256 = vunpack.c.h.b16 %v128
  %v257 = vpack.c.b16 %v229, %v225
  %v258 = vpack.c.b16 %v230, %v226
  %v259 = vpack.c.b16 %v231, %v227
  %v260 = vpack.c.b16 %v232, %v228
  %v261 = vpack.c.b16 %v237, %v233
  %v262 = vpack.c.b16 %v238, %v234
  %v263 = vpack.c.b16 %v239, %v235
  %v264 = vpack.c.b16 %v240, %v236
  %v265 = vpack.c.b16 %v245, %v241
  %v266 = vpack.c.b16 %v246, %v242
  %v267 = vpack.c.b16 %v247, %v243
  %v268 = vpack.c.b16 %v248, %v244
  %v269 = vpack.c.b16 %v253, %v249
  %v270 = vpack.c.b16 %v254, %v250
  %v271 = vpack.c.b16 %v255, %v251
  %v272 = vpack.c.b16 %v256, %v252
  %vm289 = vcmask 523264
  %v291 = vsel %vm289, %v193, 0
  %v294 = vsel %vm289, %v194, 0
  %v297 = vsel %vm289, %v195, 0
  %v300 = vsel %vm289, %v196, 0
  %v303 = vsel %vm289, %v197, 0
  %v306 = vsel %vm289, %v198, 0
  %v309 = vsel %vm289, %v199, 0
  %v312 = vsel %vm289, %v200, 0
  %v315 = vsel %vm289, %v201, 0
  %v318 = vsel %vm289, %v202, 0
  %v321 = vsel %vm289, %v203, 0
  %v324 = vsel %vm289, %v204, 0
  %v327 = vsel %vm289, %v205, 0
  %v330 = vsel %vm289, %v206, 0
  %v333 = vsel %vm289, %v207, 0
  %v336 = vsel %vm289, %v208, 0
  %338 = vmatpush.bf16.msra.mxu0 0
  %339 = vmatpush.bf16.msra.mxu0 0
  %340 = vmatpush.bf16.msra.mxu0 0
  %341 = vmatpush.bf16.msra.mxu0 0
  %342 = vmatpush.bf16.msra.mxu0 %v269
  %343 = vmatpush.bf16.msra.mxu0 %v265
  %344 = vmatpush.bf16.msra.mxu0 %v261
  %345 = vmatpush.bf16.msra.mxu0 %v257
  %346 = vmatmul.bf16.gmra.mxu0 %v291
  %v347 = vpop.f32.mrf.mxu0
  %v348 = vadd.f32 0.0, %v347
  %v349 = vpop.f32.mrf.mxu0
  %v350 = vadd.f32 0.0, %v349
  %351 = vmatmul.bf16.gmra.mxu0 %v294
  %v352 = vpop.f32.mrf.mxu0
  %v353 = vadd.f32 0.0, %v352
  %v354 = vpop.f32.mrf.mxu0
  %v355 = vadd.f32 0.0, %v354
  %356 = vmatmul.bf16.gmra.mxu0 %v297
  %v357 = vpop.f32.mrf.mxu0
  %v358 = vadd.f32 0.0, %v357
  %v359 = vpop.f32.mrf.mxu0
  %v360 = vadd.f32 0.0, %v359
  %361 = vmatmul.bf16.gmra.mxu0 %v300
  %v362 = vpop.f32.mrf.mxu0
  %v363 = vadd.f32 0.0, %v362
  %v364 = vpop.f32.mrf.mxu0
  %v365 = vadd.f32 0.0, %v364
  %366 = vmatmul.bf16.gmra.mxu0 %v303
  %v367 = vpop.f32.mrf.mxu0
  %v368 = vadd.f32 0.0, %v367
  %v369 = vpop.f32.mrf.mxu0
  %v370 = vadd.f32 0.0, %v369
  %371 = vmatmul.bf16.gmra.mxu0 %v306
  %v372 = vpop.f32.mrf.mxu0
  %v373 = vadd.f32 0.0, %v372
  %v374 = vpop.f32.mrf.mxu0
  %v375 = vadd.f32 0.0, %v374
  %376 = vmatmul.bf16.gmra.mxu0 %v309
  %v377 = vpop.f32.mrf.mxu0
  %v378 = vadd.f32 0.0, %v377
  %v379 = vpop.f32.mrf.mxu0
  %v380 = vadd.f32 0.0, %v379
  %381 = vmatmul.bf16.gmra.mxu0 %v312
  %v382 = vpop.f32.mrf.mxu0
  %v383 = vadd.f32 0.0, %v382
  %v384 = vpop.f32.mrf.mxu0
  %v385 = vadd.f32 0.0, %v384
  %386 = vmatmul.bf16.gmra.mxu0 %v315
  %v387 = vpop.f32.mrf.mxu0
  %v388 = vadd.f32 0.0, %v387
  %v389 = vpop.f32.mrf.mxu0
  %v390 = vadd.f32 0.0, %v389
  %391 = vmatmul.bf16.gmra.mxu0 %v318
  %v392 = vpop.f32.mrf.mxu0
  %v393 = vadd.f32 0.0, %v392
  %v394 = vpop.f32.mrf.mxu0
  %v395 = vadd.f32 0.0, %v394
  %396 = vmatmul.bf16.gmra.mxu0 %v321
  %v397 = vpop.f32.mrf.mxu0
  %v398 = vadd.f32 0.0, %v397
  %v399 = vpop.f32.mrf.mxu0
  %v400 = vadd.f32 0.0, %v399
  %401 = vmatmul.bf16.gmra.mxu0 %v324
  %v402 = vpop.f32.mrf.mxu0
  %v403 = vadd.f32 0.0, %v402
  %v404 = vpop.f32.mrf.mxu0
  %v405 = vadd.f32 0.0, %v404
  %406 = vmatmul.bf16.gmra.mxu0 %v327
  %v407 = vpop.f32.mrf.mxu0
  %v408 = vadd.f32 0.0, %v407
  %v409 = vpop.f32.mrf.mxu0
  %v410 = vadd.f32 0.0, %v409
  %411 = vmatmul.bf16.gmra.mxu0 %v330
  %v412 = vpop.f32.mrf.mxu0
  %v413 = vadd.f32 0.0, %v412
  %v414 = vpop.f32.mrf.mxu0
  %v415 = vadd.f32 0.0, %v414
  %416 = vmatmul.bf16.gmra.mxu0 %v333
  %v417 = vpop.f32.mrf.mxu0
  %v418 = vadd.f32 0.0, %v417
  %v419 = vpop.f32.mrf.mxu0
  %v420 = vadd.f32 0.0, %v419
  %421 = vmatmul.bf16.gmra.mxu0 %v336
  %v422 = vpop.f32.mrf.mxu0
  %v423 = vadd.f32 0.0, %v422
  %v424 = vpop.f32.mrf.mxu0
  %v425 = vadd.f32 0.0, %v424
  %426 = vdwg.mxu0
  %427 = vmatpush.bf16.msra.mxu0 0
  %428 = vmatpush.bf16.msra.mxu0 0
  %429 = vmatpush.bf16.msra.mxu0 0
  %430 = vmatpush.bf16.msra.mxu0 0
  %431 = vmatpush.bf16.msra.mxu0 %v270
  %432 = vmatpush.bf16.msra.mxu0 %v266
  %433 = vmatpush.bf16.msra.mxu0 %v262
  %434 = vmatpush.bf16.msra.mxu0 %v258
  %435 = vmatmul.bf16.gmra.mxu0 %v291
  %v436 = vpop.f32.mrf.mxu0
  %v437 = vadd.f32 0.0, %v436
  %v438 = vpop.f32.mrf.mxu0
  %v439 = vadd.f32 0.0, %v438
  %440 = vmatmul.bf16.gmra.mxu0 %v294
  %v441 = vpop.f32.mrf.mxu0
  %v442 = vadd.f32 0.0, %v441
  %v443 = vpop.f32.mrf.mxu0
  %v444 = vadd.f32 0.0, %v443
  %445 = vmatmul.bf16.gmra.mxu0 %v297
  %v446 = vpop.f32.mrf.mxu0
  %v447 = vadd.f32 0.0, %v446
  %v448 = vpop.f32.mrf.mxu0
  %v449 = vadd.f32 0.0, %v448
  %450 = vmatmul.bf16.gmra.mxu0 %v300
  %v451 = vpop.f32.mrf.mxu0
  %v452 = vadd.f32 0.0, %v451
  %v453 = vpop.f32.mrf.mxu0
  %v454 = vadd.f32 0.0, %v453
  %455 = vmatmul.bf16.gmra.mxu0 %v303
  %v456 = vpop.f32.mrf.mxu0
  %v457 = vadd.f32 0.0, %v456
  %v458 = vpop.f32.mrf.mxu0
  %v459 = vadd.f32 0.0, %v458
  %460 = vmatmul.bf16.gmra.mxu0 %v306
  %v461 = vpop.f32.mrf.mxu0
  %v462 = vadd.f32 0.0, %v461
  %v463 = vpop.f32.mrf.mxu0
  %v464 = vadd.f32 0.0, %v463
  %465 = vmatmul.bf16.gmra.mxu0 %v309
  %v466 = vpop.f32.mrf.mxu0
  %v467 = vadd.f32 0.0, %v466
  %v468 = vpop.f32.mrf.mxu0
  %v469 = vadd.f32 0.0, %v468
  %470 = vmatmul.bf16.gmra.mxu0 %v312
  %v471 = vpop.f32.mrf.mxu0
  %v472 = vadd.f32 0.0, %v471
  %v473 = vpop.f32.mrf.mxu0
  %v474 = vadd.f32 0.0, %v473
  %475 = vmatmul.bf16.gmra.mxu0 %v315
  %v476 = vpop.f32.mrf.mxu0
  %v477 = vadd.f32 0.0, %v476
  %v478 = vpop.f32.mrf.mxu0
  %v479 = vadd.f32 0.0, %v478
  %480 = vmatmul.bf16.gmra.mxu0 %v318
  %v481 = vpop.f32.mrf.mxu0
  %v482 = vadd.f32 0.0, %v481
  %v483 = vpop.f32.mrf.mxu0
  %v484 = vadd.f32 0.0, %v483
  %485 = vmatmul.bf16.gmra.mxu0 %v321
  %v486 = vpop.f32.mrf.mxu0
  %v487 = vadd.f32 0.0, %v486
  %v488 = vpop.f32.mrf.mxu0
  %v489 = vadd.f32 0.0, %v488
  %490 = vmatmul.bf16.gmra.mxu0 %v324
  %v491 = vpop.f32.mrf.mxu0
  %v492 = vadd.f32 0.0, %v491
  %v493 = vpop.f32.mrf.mxu0
  %v494 = vadd.f32 0.0, %v493
  %495 = vmatmul.bf16.gmra.mxu0 %v327
  %v496 = vpop.f32.mrf.mxu0
  %v497 = vadd.f32 0.0, %v496
  %v498 = vpop.f32.mrf.mxu0
  %v499 = vadd.f32 0.0, %v498
  %500 = vmatmul.bf16.gmra.mxu0 %v330
  %v501 = vpop.f32.mrf.mxu0
  %v502 = vadd.f32 0.0, %v501
  %v503 = vpop.f32.mrf.mxu0
  %v504 = vadd.f32 0.0, %v503
  %505 = vmatmul.bf16.gmra.mxu0 %v333
  %v506 = vpop.f32.mrf.mxu0
  %v507 = vadd.f32 0.0, %v506
  %v508 = vpop.f32.mrf.mxu0
  %v509 = vadd.f32 0.0, %v508
  %510 = vmatmul.bf16.gmra.mxu0 %v336
  %v511 = vpop.f32.mrf.mxu0
  %v512 = vadd.f32 0.0, %v511
  %v513 = vpop.f32.mrf.mxu0
  %v514 = vadd.f32 0.0, %v513
  %515 = vdwg.mxu0
  %516 = vmatpush.bf16.msra.mxu0 0
  %517 = vmatpush.bf16.msra.mxu0 0
  %518 = vmatpush.bf16.msra.mxu0 0
  %519 = vmatpush.bf16.msra.mxu0 0
  %520 = vmatpush.bf16.msra.mxu0 %v271
  %521 = vmatpush.bf16.msra.mxu0 %v267
  %522 = vmatpush.bf16.msra.mxu0 %v263
  %523 = vmatpush.bf16.msra.mxu0 %v259
  %524 = vmatmul.bf16.gmra.mxu0 %v291
  %v525 = vpop.f32.mrf.mxu0
  %v526 = vadd.f32 0.0, %v525
  %v527 = vpop.f32.mrf.mxu0
  %v528 = vadd.f32 0.0, %v527
  %529 = vmatmul.bf16.gmra.mxu0 %v294
  %v530 = vpop.f32.mrf.mxu0
  %v531 = vadd.f32 0.0, %v530
  %v532 = vpop.f32.mrf.mxu0
  %v533 = vadd.f32 0.0, %v532
  %534 = vmatmul.bf16.gmra.mxu0 %v297
  %v535 = vpop.f32.mrf.mxu0
  %v536 = vadd.f32 0.0, %v535
  %v537 = vpop.f32.mrf.mxu0
  %v538 = vadd.f32 0.0, %v537
  %539 = vmatmul.bf16.gmra.mxu0 %v300
  %v540 = vpop.f32.mrf.mxu0
  %v541 = vadd.f32 0.0, %v540
  %v542 = vpop.f32.mrf.mxu0
  %v543 = vadd.f32 0.0, %v542
  %544 = vmatmul.bf16.gmra.mxu0 %v303
  %v545 = vpop.f32.mrf.mxu0
  %v546 = vadd.f32 0.0, %v545
  %v547 = vpop.f32.mrf.mxu0
  %v548 = vadd.f32 0.0, %v547
  %549 = vmatmul.bf16.gmra.mxu0 %v306
  %v550 = vpop.f32.mrf.mxu0
  %v551 = vadd.f32 0.0, %v550
  %v552 = vpop.f32.mrf.mxu0
  %v553 = vadd.f32 0.0, %v552
  %554 = vmatmul.bf16.gmra.mxu0 %v309
  %v555 = vpop.f32.mrf.mxu0
  %v556 = vadd.f32 0.0, %v555
  %v557 = vpop.f32.mrf.mxu0
  %v558 = vadd.f32 0.0, %v557
  %559 = vmatmul.bf16.gmra.mxu0 %v312
  %v560 = vpop.f32.mrf.mxu0
  %v561 = vadd.f32 0.0, %v560
  %v562 = vpop.f32.mrf.mxu0
  %v563 = vadd.f32 0.0, %v562
  %564 = vmatmul.bf16.gmra.mxu0 %v315
  %v565 = vpop.f32.mrf.mxu0
  %v566 = vadd.f32 0.0, %v565
  %v567 = vpop.f32.mrf.mxu0
  %v568 = vadd.f32 0.0, %v567
  %569 = vmatmul.bf16.gmra.mxu0 %v318
  %v570 = vpop.f32.mrf.mxu0
  %v571 = vadd.f32 0.0, %v570
  %v572 = vpop.f32.mrf.mxu0
  %v573 = vadd.f32 0.0, %v572
  %574 = vmatmul.bf16.gmra.mxu0 %v321
  %v575 = vpop.f32.mrf.mxu0
  %v576 = vadd.f32 0.0, %v575
  %v577 = vpop.f32.mrf.mxu0
  %v578 = vadd.f32 0.0, %v577
  %579 = vmatmul.bf16.gmra.mxu0 %v324
  %v580 = vpop.f32.mrf.mxu0
  %v581 = vadd.f32 0.0, %v580
  %v582 = vpop.f32.mrf.mxu0
  %v583 = vadd.f32 0.0, %v582
  %584 = vmatmul.bf16.gmra.mxu0 %v327
  %v585 = vpop.f32.mrf.mxu0
  %v586 = vadd.f32 0.0, %v585
  %v587 = vpop.f32.mrf.mxu0
  %v588 = vadd.f32 0.0, %v587
  %589 = vmatmul.bf16.gmra.mxu0 %v330
  %v590 = vpop.f32.mrf.mxu0
  %v591 = vadd.f32 0.0, %v590
  %v592 = vpop.f32.mrf.mxu0
  %v593 = vadd.f32 0.0, %v592
  %594 = vmatmul.bf16.gmra.mxu0 %v333
  %v595 = vpop.f32.mrf.mxu0
  %v596 = vadd.f32 0.0, %v595
  %v597 = vpop.f32.mrf.mxu0
  %v598 = vadd.f32 0.0, %v597
  %599 = vmatmul.bf16.gmra.mxu0 %v336
  %v600 = vpop.f32.mrf.mxu0
  %v601 = vadd.f32 0.0, %v600
  %v602 = vpop.f32.mrf.mxu0
  %v603 = vadd.f32 0.0, %v602
  %604 = vdwg.mxu0
  %605 = vmatpush.bf16.msra.mxu0 0
  %606 = vmatpush.bf16.msra.mxu0 0
  %607 = vmatpush.bf16.msra.mxu0 0
  %608 = vmatpush.bf16.msra.mxu0 0
  %609 = vmatpush.bf16.msra.mxu0 %v272
  %610 = vmatpush.bf16.msra.mxu0 %v268
  %611 = vmatpush.bf16.msra.mxu0 %v264
  %612 = vmatpush.bf16.msra.mxu0 %v260
  %613 = vmatmul.bf16.gmra.mxu0 %v291
  %v614 = vpop.f32.mrf.mxu0
  %v615 = vadd.f32 0.0, %v614
  %v616 = vpop.f32.mrf.mxu0
  %v617 = vadd.f32 0.0, %v616
  %618 = vmatmul.bf16.gmra.mxu0 %v294
  %v619 = vpop.f32.mrf.mxu0
  %v620 = vadd.f32 0.0, %v619
  %v621 = vpop.f32.mrf.mxu0
  %v622 = vadd.f32 0.0, %v621
  %623 = vmatmul.bf16.gmra.mxu0 %v297
  %v624 = vpop.f32.mrf.mxu0
  %v625 = vadd.f32 0.0, %v624
  %v626 = vpop.f32.mrf.mxu0
  %v627 = vadd.f32 0.0, %v626
  %628 = vmatmul.bf16.gmra.mxu0 %v300
  %v629 = vpop.f32.mrf.mxu0
  %v630 = vadd.f32 0.0, %v629
  %v631 = vpop.f32.mrf.mxu0
  %v632 = vadd.f32 0.0, %v631
  %633 = vmatmul.bf16.gmra.mxu0 %v303
  %v634 = vpop.f32.mrf.mxu0
  %v635 = vadd.f32 0.0, %v634
  %v636 = vpop.f32.mrf.mxu0
  %v637 = vadd.f32 0.0, %v636
  %638 = vmatmul.bf16.gmra.mxu0 %v306
  %v639 = vpop.f32.mrf.mxu0
  %v640 = vadd.f32 0.0, %v639
  %v641 = vpop.f32.mrf.mxu0
  %v642 = vadd.f32 0.0, %v641
  %643 = vmatmul.bf16.gmra.mxu0 %v309
  %v644 = vpop.f32.mrf.mxu0
  %v645 = vadd.f32 0.0, %v644
  %v646 = vpop.f32.mrf.mxu0
  %v647 = vadd.f32 0.0, %v646
  %648 = vmatmul.bf16.gmra.mxu0 %v312
  %v649 = vpop.f32.mrf.mxu0
  %v650 = vadd.f32 0.0, %v649
  %v651 = vpop.f32.mrf.mxu0
  %v652 = vadd.f32 0.0, %v651
  %653 = vmatmul.bf16.gmra.mxu0 %v315
  %v654 = vpop.f32.mrf.mxu0
  %v655 = vadd.f32 0.0, %v654
  %v656 = vpop.f32.mrf.mxu0
  %v657 = vadd.f32 0.0, %v656
  %658 = vmatmul.bf16.gmra.mxu0 %v318
  %v659 = vpop.f32.mrf.mxu0
  %v660 = vadd.f32 0.0, %v659
  %v661 = vpop.f32.mrf.mxu0
  %v662 = vadd.f32 0.0, %v661
  %663 = vmatmul.bf16.gmra.mxu0 %v321
  %v664 = vpop.f32.mrf.mxu0
  %v665 = vadd.f32 0.0, %v664
  %v666 = vpop.f32.mrf.mxu0
  %v667 = vadd.f32 0.0, %v666
  %668 = vmatmul.bf16.gmra.mxu0 %v324
  %v669 = vpop.f32.mrf.mxu0
  %v670 = vadd.f32 0.0, %v669
  %v671 = vpop.f32.mrf.mxu0
  %v672 = vadd.f32 0.0, %v671
  %673 = vmatmul.bf16.gmra.mxu0 %v327
  %v674 = vpop.f32.mrf.mxu0
  %v675 = vadd.f32 0.0, %v674
  %v676 = vpop.f32.mrf.mxu0
  %v677 = vadd.f32 0.0, %v676
  %678 = vmatmul.bf16.gmra.mxu0 %v330
  %v679 = vpop.f32.mrf.mxu0
  %v680 = vadd.f32 0.0, %v679
  %v681 = vpop.f32.mrf.mxu0
  %v682 = vadd.f32 0.0, %v681
  %683 = vmatmul.bf16.gmra.mxu0 %v333
  %v684 = vpop.f32.mrf.mxu0
  %v685 = vadd.f32 0.0, %v684
  %v686 = vpop.f32.mrf.mxu0
  %v687 = vadd.f32 0.0, %v686
  %688 = vmatmul.bf16.gmra.mxu0 %v336
  %v689 = vpop.f32.mrf.mxu0
  %v690 = vadd.f32 0.0, %v689
  %v691 = vpop.f32.mrf.mxu0
  %v692 = vadd.f32 0.0, %v691
  %693 = vdwg.mxu0
  %v726 = vunpack.c.l.b16 %v33
  %v727 = vunpack.c.l.b16 %v34
  %v728 = vunpack.c.l.b16 %v35
  %v729 = vunpack.c.l.b16 %v36
  %v730 = vunpack.c.l.b16 %v37
  %v731 = vunpack.c.l.b16 %v38
  %v732 = vunpack.c.l.b16 %v39
  %v733 = vunpack.c.l.b16 %v40
  %v734 = vunpack.c.l.b16 %v41
  %v735 = vunpack.c.l.b16 %v42
  %v736 = vunpack.c.l.b16 %v43
  %v737 = vunpack.c.l.b16 %v44
  %v738 = vunpack.c.l.b16 %v45
  %v739 = vunpack.c.l.b16 %v46
  %v740 = vunpack.c.l.b16 %v47
  %v741 = vunpack.c.l.b16 %v48
  %v742 = vunpack.c.l.b16 %v49
  %v743 = vunpack.c.l.b16 %v50
  %v744 = vunpack.c.l.b16 %v51
  %v745 = vunpack.c.l.b16 %v52
  %v746 = vunpack.c.l.b16 %v53
  %v747 = vunpack.c.l.b16 %v54
  %v748 = vunpack.c.l.b16 %v55
  %v749 = vunpack.c.l.b16 %v56
  %v750 = vunpack.c.l.b16 %v57
  %v751 = vunpack.c.l.b16 %v58
  %v752 = vunpack.c.l.b16 %v59
  %v753 = vunpack.c.l.b16 %v60
  %v754 = vunpack.c.l.b16 %v61
  %v755 = vunpack.c.l.b16 %v62
  %v756 = vunpack.c.l.b16 %v63
  %v757 = vunpack.c.l.b16 %v64
  %v758 = vpack.c.b16 %v727, %v726
  %v759 = vpack.c.b16 %v729, %v728
  %v760 = vpack.c.b16 %v731, %v730
  %v761 = vpack.c.b16 %v733, %v732
  %v762 = vpack.c.b16 %v735, %v734
  %v763 = vpack.c.b16 %v737, %v736
  %v764 = vpack.c.b16 %v739, %v738
  %v765 = vpack.c.b16 %v741, %v740
  %v766 = vpack.c.b16 %v743, %v742
  %v767 = vpack.c.b16 %v745, %v744
  %v768 = vpack.c.b16 %v747, %v746
  %v769 = vpack.c.b16 %v749, %v748
  %v770 = vpack.c.b16 %v751, %v750
  %v771 = vpack.c.b16 %v753, %v752
  %v772 = vpack.c.b16 %v755, %v754
  %v773 = vpack.c.b16 %v757, %v756
  %v790 = vunpack.c.l.b16 %v65
  %v791 = vunpack.c.h.b16 %v65
  %v792 = vunpack.c.l.b16 %v66
  %v793 = vunpack.c.h.b16 %v66
  %v794 = vunpack.c.l.b16 %v67
  %v795 = vunpack.c.h.b16 %v67
  %v796 = vunpack.c.l.b16 %v68
  %v797 = vunpack.c.h.b16 %v68
  %v798 = vunpack.c.l.b16 %v69
  %v799 = vunpack.c.h.b16 %v69
  %v800 = vunpack.c.l.b16 %v70
  %v801 = vunpack.c.h.b16 %v70
  %v802 = vunpack.c.l.b16 %v71
  %v803 = vunpack.c.h.b16 %v71
  %v804 = vunpack.c.l.b16 %v72
  %v805 = vunpack.c.h.b16 %v72
  %v806 = vunpack.c.l.b16 %v73
  %v807 = vunpack.c.h.b16 %v73
  %v808 = vunpack.c.l.b16 %v74
  %v809 = vunpack.c.h.b16 %v74
  %v810 = vunpack.c.l.b16 %v75
  %v811 = vunpack.c.h.b16 %v75
  %v812 = vunpack.c.l.b16 %v76
  %v813 = vunpack.c.h.b16 %v76
  %v814 = vunpack.c.l.b16 %v77
  %v815 = vunpack.c.h.b16 %v77
  %v816 = vunpack.c.l.b16 %v78
  %v817 = vunpack.c.h.b16 %v78
  %v818 = vunpack.c.l.b16 %v79
  %v819 = vunpack.c.h.b16 %v79
  %v820 = vunpack.c.l.b16 %v80
  %v821 = vunpack.c.h.b16 %v80
  %v822 = vpack.c.b16 %v794, %v790
  %v823 = vpack.c.b16 %v795, %v791
  %v824 = vpack.c.b16 %v796, %v792
  %v825 = vpack.c.b16 %v797, %v793
  %v826 = vpack.c.b16 %v802, %v798
  %v827 = vpack.c.b16 %v803, %v799
  %v828 = vpack.c.b16 %v804, %v800
  %v829 = vpack.c.b16 %v805, %v801
  %v830 = vpack.c.b16 %v810, %v806
  %v831 = vpack.c.b16 %v811, %v807
  %v832 = vpack.c.b16 %v812, %v808
  %v833 = vpack.c.b16 %v813, %v809
  %v834 = vpack.c.b16 %v818, %v814
  %v835 = vpack.c.b16 %v819, %v815
  %v836 = vpack.c.b16 %v820, %v816
  %v837 = vpack.c.b16 %v821, %v817
  %v855 = vsel %vm289, %v758, 0
  %v858 = vsel %vm289, %v759, 0
  %v861 = vsel %vm289, %v760, 0
  %v864 = vsel %vm289, %v761, 0
  %v867 = vsel %vm289, %v762, 0
  %v870 = vsel %vm289, %v763, 0
  %v873 = vsel %vm289, %v764, 0
  %v876 = vsel %vm289, %v765, 0
  %v879 = vsel %vm289, %v766, 0
  %v882 = vsel %vm289, %v767, 0
  %v885 = vsel %vm289, %v768, 0
  %v888 = vsel %vm289, %v769, 0
  %v891 = vsel %vm289, %v770, 0
  %v894 = vsel %vm289, %v771, 0
  %v897 = vsel %vm289, %v772, 0
  %v900 = vsel %vm289, %v773, 0
  %902 = vmatpush.bf16.msra.mxu0 0
  %903 = vmatpush.bf16.msra.mxu0 0
  %904 = vmatpush.bf16.msra.mxu0 0
  %905 = vmatpush.bf16.msra.mxu0 0
  %906 = vmatpush.bf16.msra.mxu0 %v834
  %907 = vmatpush.bf16.msra.mxu0 %v830
  %908 = vmatpush.bf16.msra.mxu0 %v826
  %909 = vmatpush.bf16.msra.mxu0 %v822
  %910 = vmatmul.bf16.gmra.mxu0 %v855
  %v911 = vpop.f32.mrf.mxu0
  %v912 = vadd.f32 %v348, %v911
  %v913 = vpop.f32.mrf.mxu0
  %v914 = vadd.f32 %v350, %v913
  %915 = vmatmul.bf16.gmra.mxu0 %v858
  %v916 = vpop.f32.mrf.mxu0
  %v917 = vadd.f32 %v353, %v916
  %v918 = vpop.f32.mrf.mxu0
  %v919 = vadd.f32 %v355, %v918
  %920 = vmatmul.bf16.gmra.mxu0 %v861
  %v921 = vpop.f32.mrf.mxu0
  %v922 = vadd.f32 %v358, %v921
  %v923 = vpop.f32.mrf.mxu0
  %v924 = vadd.f32 %v360, %v923
  %925 = vmatmul.bf16.gmra.mxu0 %v864
  %v926 = vpop.f32.mrf.mxu0
  %v927 = vadd.f32 %v363, %v926
  %v928 = vpop.f32.mrf.mxu0
  %v929 = vadd.f32 %v365, %v928
  %930 = vmatmul.bf16.gmra.mxu0 %v867
  %v931 = vpop.f32.mrf.mxu0
  %v932 = vadd.f32 %v368, %v931
  %v933 = vpop.f32.mrf.mxu0
  %v934 = vadd.f32 %v370, %v933
  %935 = vmatmul.bf16.gmra.mxu0 %v870
  %v936 = vpop.f32.mrf.mxu0
  %v937 = vadd.f32 %v373, %v936
  %v938 = vpop.f32.mrf.mxu0
  %v939 = vadd.f32 %v375, %v938
  %940 = vmatmul.bf16.gmra.mxu0 %v873
  %v941 = vpop.f32.mrf.mxu0
  %v942 = vadd.f32 %v378, %v941
  %v943 = vpop.f32.mrf.mxu0
  %v944 = vadd.f32 %v380, %v943
  %945 = vmatmul.bf16.gmra.mxu0 %v876
  %v946 = vpop.f32.mrf.mxu0
  %v947 = vadd.f32 %v383, %v946
  %v948 = vpop.f32.mrf.mxu0
  %v949 = vadd.f32 %v385, %v948
  %950 = vmatmul.bf16.gmra.mxu0 %v879
  %v951 = vpop.f32.mrf.mxu0
  %v952 = vadd.f32 %v388, %v951
  %v953 = vpop.f32.mrf.mxu0
  %v954 = vadd.f32 %v390, %v953
  %955 = vmatmul.bf16.gmra.mxu0 %v882
  %v956 = vpop.f32.mrf.mxu0
  %v957 = vadd.f32 %v393, %v956
  %v958 = vpop.f32.mrf.mxu0
  %v959 = vadd.f32 %v395, %v958
  %960 = vmatmul.bf16.gmra.mxu0 %v885
  %v961 = vpop.f32.mrf.mxu0
  %v962 = vadd.f32 %v398, %v961
  %v963 = vpop.f32.mrf.mxu0
  %v964 = vadd.f32 %v400, %v963
  %965 = vmatmul.bf16.gmra.mxu0 %v888
  %v966 = vpop.f32.mrf.mxu0
  %v967 = vadd.f32 %v403, %v966
  %v968 = vpop.f32.mrf.mxu0
  %v969 = vadd.f32 %v405, %v968
  %970 = vmatmul.bf16.gmra.mxu0 %v891
  %v971 = vpop.f32.mrf.mxu0
  %v972 = vadd.f32 %v408, %v971
  %v973 = vpop.f32.mrf.mxu0
  %v974 = vadd.f32 %v410, %v973
  %975 = vmatmul.bf16.gmra.mxu0 %v894
  %v976 = vpop.f32.mrf.mxu0
  %v977 = vadd.f32 %v413, %v976
  %v978 = vpop.f32.mrf.mxu0
  %v979 = vadd.f32 %v415, %v978
  %980 = vmatmul.bf16.gmra.mxu0 %v897
  %v981 = vpop.f32.mrf.mxu0
  %v982 = vadd.f32 %v418, %v981
  %v983 = vpop.f32.mrf.mxu0
  %v984 = vadd.f32 %v420, %v983
  %985 = vmatmul.bf16.gmra.mxu0 %v900
  %v986 = vpop.f32.mrf.mxu0
  %v987 = vadd.f32 %v423, %v986
  %v988 = vpop.f32.mrf.mxu0
  %v989 = vadd.f32 %v425, %v988
  %990 = vdwg.mxu0
  %991 = vmatpush.bf16.msra.mxu0 0
  %992 = vmatpush.bf16.msra.mxu0 0
  %993 = vmatpush.bf16.msra.mxu0 0
  %994 = vmatpush.bf16.msra.mxu0 0
  %995 = vmatpush.bf16.msra.mxu0 %v835
  %996 = vmatpush.bf16.msra.mxu0 %v831
  %997 = vmatpush.bf16.msra.mxu0 %v827
  %998 = vmatpush.bf16.msra.mxu0 %v823
  %999 = vmatmul.bf16.gmra.mxu0 %v855
  %v1000 = vpop.f32.mrf.mxu0
  %v1001 = vadd.f32 %v437, %v1000
  %v1002 = vpop.f32.mrf.mxu0
  %v1003 = vadd.f32 %v439, %v1002
  %1004 = vmatmul.bf16.gmra.mxu0 %v858
  %v1005 = vpop.f32.mrf.mxu0
  %v1006 = vadd.f32 %v442, %v1005
  %v1007 = vpop.f32.mrf.mxu0
  %v1008 = vadd.f32 %v444, %v1007
  %1009 = vmatmul.bf16.gmra.mxu0 %v861
  %v1010 = vpop.f32.mrf.mxu0
  %v1011 = vadd.f32 %v447, %v1010
  %v1012 = vpop.f32.mrf.mxu0
  %v1013 = vadd.f32 %v449, %v1012
  %1014 = vmatmul.bf16.gmra.mxu0 %v864
  %v1015 = vpop.f32.mrf.mxu0
  %v1016 = vadd.f32 %v452, %v1015
  %v1017 = vpop.f32.mrf.mxu0
  %v1018 = vadd.f32 %v454, %v1017
  %1019 = vmatmul.bf16.gmra.mxu0 %v867
  %v1020 = vpop.f32.mrf.mxu0
  %v1021 = vadd.f32 %v457, %v1020
  %v1022 = vpop.f32.mrf.mxu0
  %v1023 = vadd.f32 %v459, %v1022
  %1024 = vmatmul.bf16.gmra.mxu0 %v870
  %v1025 = vpop.f32.mrf.mxu0
  %v1026 = vadd.f32 %v462, %v1025
  %v1027 = vpop.f32.mrf.mxu0
  %v1028 = vadd.f32 %v464, %v1027
  %1029 = vmatmul.bf16.gmra.mxu0 %v873
  %v1030 = vpop.f32.mrf.mxu0
  %v1031 = vadd.f32 %v467, %v1030
  %v1032 = vpop.f32.mrf.mxu0
  %v1033 = vadd.f32 %v469, %v1032
  %1034 = vmatmul.bf16.gmra.mxu0 %v876
  %v1035 = vpop.f32.mrf.mxu0
  %v1036 = vadd.f32 %v472, %v1035
  %v1037 = vpop.f32.mrf.mxu0
  %v1038 = vadd.f32 %v474, %v1037
  %1039 = vmatmul.bf16.gmra.mxu0 %v879
  %v1040 = vpop.f32.mrf.mxu0
  %v1041 = vadd.f32 %v477, %v1040
  %v1042 = vpop.f32.mrf.mxu0
  %v1043 = vadd.f32 %v479, %v1042
  %1044 = vmatmul.bf16.gmra.mxu0 %v882
  %v1045 = vpop.f32.mrf.mxu0
  %v1046 = vadd.f32 %v482, %v1045
  %v1047 = vpop.f32.mrf.mxu0
  %v1048 = vadd.f32 %v484, %v1047
  %1049 = vmatmul.bf16.gmra.mxu0 %v885
  %v1050 = vpop.f32.mrf.mxu0
  %v1051 = vadd.f32 %v487, %v1050
  %v1052 = vpop.f32.mrf.mxu0
  %v1053 = vadd.f32 %v489, %v1052
  %1054 = vmatmul.bf16.gmra.mxu0 %v888
  %v1055 = vpop.f32.mrf.mxu0
  %v1056 = vadd.f32 %v492, %v1055
  %v1057 = vpop.f32.mrf.mxu0
  %v1058 = vadd.f32 %v494, %v1057
  %1059 = vmatmul.bf16.gmra.mxu0 %v891
  %v1060 = vpop.f32.mrf.mxu0
  %v1061 = vadd.f32 %v497, %v1060
  %v1062 = vpop.f32.mrf.mxu0
  %v1063 = vadd.f32 %v499, %v1062
  %1064 = vmatmul.bf16.gmra.mxu0 %v894
  %v1065 = vpop.f32.mrf.mxu0
  %v1066 = vadd.f32 %v502, %v1065
  %v1067 = vpop.f32.mrf.mxu0
  %v1068 = vadd.f32 %v504, %v1067
  %1069 = vmatmul.bf16.gmra.mxu0 %v897
  %v1070 = vpop.f32.mrf.mxu0
  %v1071 = vadd.f32 %v507, %v1070
  %v1072 = vpop.f32.mrf.mxu0
  %v1073 = vadd.f32 %v509, %v1072
  %1074 = vmatmul.bf16.gmra.mxu0 %v900
  %v1075 = vpop.f32.mrf.mxu0
  %v1076 = vadd.f32 %v512, %v1075
  %v1077 = vpop.f32.mrf.mxu0
  %v1078 = vadd.f32 %v514, %v1077
  %1079 = vdwg.mxu0
  %1080 = vmatpush.bf16.msra.mxu0 0
  %1081 = vmatpush.bf16.msra.mxu0 0
  %1082 = vmatpush.bf16.msra.mxu0 0
  %1083 = vmatpush.bf16.msra.mxu0 0
  %1084 = vmatpush.bf16.msra.mxu0 %v836
  %1085 = vmatpush.bf16.msra.mxu0 %v832
  %1086 = vmatpush.bf16.msra.mxu0 %v828
  %1087 = vmatpush.bf16.msra.mxu0 %v824
  %1088 = vmatmul.bf16.gmra.mxu0 %v855
  %v1089 = vpop.f32.mrf.mxu0
  %v1090 = vadd.f32 %v526, %v1089
  %v1091 = vpop.f32.mrf.mxu0
  %v1092 = vadd.f32 %v528, %v1091
  %1093 = vmatmul.bf16.gmra.mxu0 %v858
  %v1094 = vpop.f32.mrf.mxu0
  %v1095 = vadd.f32 %v531, %v1094
  %v1096 = vpop.f32.mrf.mxu0
  %v1097 = vadd.f32 %v533, %v1096
  %1098 = vmatmul.bf16.gmra.mxu0 %v861
  %v1099 = vpop.f32.mrf.mxu0
  %v1100 = vadd.f32 %v536, %v1099
  %v1101 = vpop.f32.mrf.mxu0
  %v1102 = vadd.f32 %v538, %v1101
  %1103 = vmatmul.bf16.gmra.mxu0 %v864
  %v1104 = vpop.f32.mrf.mxu0
  %v1105 = vadd.f32 %v541, %v1104
  %v1106 = vpop.f32.mrf.mxu0
  %v1107 = vadd.f32 %v543, %v1106
  %1108 = vmatmul.bf16.gmra.mxu0 %v867
  %v1109 = vpop.f32.mrf.mxu0
  %v1110 = vadd.f32 %v546, %v1109
  %v1111 = vpop.f32.mrf.mxu0
  %v1112 = vadd.f32 %v548, %v1111
  %1113 = vmatmul.bf16.gmra.mxu0 %v870
  %v1114 = vpop.f32.mrf.mxu0
  %v1115 = vadd.f32 %v551, %v1114
  %v1116 = vpop.f32.mrf.mxu0
  %v1117 = vadd.f32 %v553, %v1116
  %1118 = vmatmul.bf16.gmra.mxu0 %v873
  %v1119 = vpop.f32.mrf.mxu0
  %v1120 = vadd.f32 %v556, %v1119
  %v1121 = vpop.f32.mrf.mxu0
  %v1122 = vadd.f32 %v558, %v1121
  %1123 = vmatmul.bf16.gmra.mxu0 %v876
  %v1124 = vpop.f32.mrf.mxu0
  %v1125 = vadd.f32 %v561, %v1124
  %v1126 = vpop.f32.mrf.mxu0
  %v1127 = vadd.f32 %v563, %v1126
  %1128 = vmatmul.bf16.gmra.mxu0 %v879
  %v1129 = vpop.f32.mrf.mxu0
  %v1130 = vadd.f32 %v566, %v1129
  %v1131 = vpop.f32.mrf.mxu0
  %v1132 = vadd.f32 %v568, %v1131
  %1133 = vmatmul.bf16.gmra.mxu0 %v882
  %v1134 = vpop.f32.mrf.mxu0
  %v1135 = vadd.f32 %v571, %v1134
  %v1136 = vpop.f32.mrf.mxu0
  %v1137 = vadd.f32 %v573, %v1136
  %1138 = vmatmul.bf16.gmra.mxu0 %v885
  %v1139 = vpop.f32.mrf.mxu0
  %v1140 = vadd.f32 %v576, %v1139
  %v1141 = vpop.f32.mrf.mxu0
  %v1142 = vadd.f32 %v578, %v1141
  %1143 = vmatmul.bf16.gmra.mxu0 %v888
  %v1144 = vpop.f32.mrf.mxu0
  %v1145 = vadd.f32 %v581, %v1144
  %v1146 = vpop.f32.mrf.mxu0
  %v1147 = vadd.f32 %v583, %v1146
  %1148 = vmatmul.bf16.gmra.mxu0 %v891
  %v1149 = vpop.f32.mrf.mxu0
  %v1150 = vadd.f32 %v586, %v1149
  %v1151 = vpop.f32.mrf.mxu0
  %v1152 = vadd.f32 %v588, %v1151
  %1153 = vmatmul.bf16.gmra.mxu0 %v894
  %v1154 = vpop.f32.mrf.mxu0
  %v1155 = vadd.f32 %v591, %v1154
  %v1156 = vpop.f32.mrf.mxu0
  %v1157 = vadd.f32 %v593, %v1156
  %1158 = vmatmul.bf16.gmra.mxu0 %v897
  %v1159 = vpop.f32.mrf.mxu0
  %v1160 = vadd.f32 %v596, %v1159
  %v1161 = vpop.f32.mrf.mxu0
  %v1162 = vadd.f32 %v598, %v1161
  %1163 = vmatmul.bf16.gmra.mxu0 %v900
  %v1164 = vpop.f32.mrf.mxu0
  %v1165 = vadd.f32 %v601, %v1164
  %v1166 = vpop.f32.mrf.mxu0
  %v1167 = vadd.f32 %v603, %v1166
  %1168 = vdwg.mxu0
  %1169 = vmatpush.bf16.msra.mxu0 0
  %1170 = vmatpush.bf16.msra.mxu0 0
  %1171 = vmatpush.bf16.msra.mxu0 0
  %1172 = vmatpush.bf16.msra.mxu0 0
  %1173 = vmatpush.bf16.msra.mxu0 %v837
  %1174 = vmatpush.bf16.msra.mxu0 %v833
  %1175 = vmatpush.bf16.msra.mxu0 %v829
  %1176 = vmatpush.bf16.msra.mxu0 %v825
  %1177 = vmatmul.bf16.gmra.mxu0 %v855
  %v1178 = vpop.f32.mrf.mxu0
  %v1179 = vadd.f32 %v615, %v1178
  %v1180 = vpop.f32.mrf.mxu0
  %v1181 = vadd.f32 %v617, %v1180
  %1182 = vmatmul.bf16.gmra.mxu0 %v858
  %v1183 = vpop.f32.mrf.mxu0
  %v1184 = vadd.f32 %v620, %v1183
  %v1185 = vpop.f32.mrf.mxu0
  %v1186 = vadd.f32 %v622, %v1185
  %1187 = vmatmul.bf16.gmra.mxu0 %v861
  %v1188 = vpop.f32.mrf.mxu0
  %v1189 = vadd.f32 %v625, %v1188
  %v1190 = vpop.f32.mrf.mxu0
  %v1191 = vadd.f32 %v627, %v1190
  %1192 = vmatmul.bf16.gmra.mxu0 %v864
  %v1193 = vpop.f32.mrf.mxu0
  %v1194 = vadd.f32 %v630, %v1193
  %v1195 = vpop.f32.mrf.mxu0
  %v1196 = vadd.f32 %v632, %v1195
  %1197 = vmatmul.bf16.gmra.mxu0 %v867
  %v1198 = vpop.f32.mrf.mxu0
  %v1199 = vadd.f32 %v635, %v1198
  %v1200 = vpop.f32.mrf.mxu0
  %v1201 = vadd.f32 %v637, %v1200
  %1202 = vmatmul.bf16.gmra.mxu0 %v870
  %v1203 = vpop.f32.mrf.mxu0
  %v1204 = vadd.f32 %v640, %v1203
  %v1205 = vpop.f32.mrf.mxu0
  %v1206 = vadd.f32 %v642, %v1205
  %1207 = vmatmul.bf16.gmra.mxu0 %v873
  %v1208 = vpop.f32.mrf.mxu0
  %v1209 = vadd.f32 %v645, %v1208
  %v1210 = vpop.f32.mrf.mxu0
  %v1211 = vadd.f32 %v647, %v1210
  %1212 = vmatmul.bf16.gmra.mxu0 %v876
  %v1213 = vpop.f32.mrf.mxu0
  %v1214 = vadd.f32 %v650, %v1213
  %v1215 = vpop.f32.mrf.mxu0
  %v1216 = vadd.f32 %v652, %v1215
  %1217 = vmatmul.bf16.gmra.mxu0 %v879
  %v1218 = vpop.f32.mrf.mxu0
  %v1219 = vadd.f32 %v655, %v1218
  %v1220 = vpop.f32.mrf.mxu0
  %v1221 = vadd.f32 %v657, %v1220
  %1222 = vmatmul.bf16.gmra.mxu0 %v882
  %v1223 = vpop.f32.mrf.mxu0
  %v1224 = vadd.f32 %v660, %v1223
  %v1225 = vpop.f32.mrf.mxu0
  %v1226 = vadd.f32 %v662, %v1225
  %1227 = vmatmul.bf16.gmra.mxu0 %v885
  %v1228 = vpop.f32.mrf.mxu0
  %v1229 = vadd.f32 %v665, %v1228
  %v1230 = vpop.f32.mrf.mxu0
  %v1231 = vadd.f32 %v667, %v1230
  %1232 = vmatmul.bf16.gmra.mxu0 %v888
  %v1233 = vpop.f32.mrf.mxu0
  %v1234 = vadd.f32 %v670, %v1233
  %v1235 = vpop.f32.mrf.mxu0
  %v1236 = vadd.f32 %v672, %v1235
  %1237 = vmatmul.bf16.gmra.mxu0 %v891
  %v1238 = vpop.f32.mrf.mxu0
  %v1239 = vadd.f32 %v675, %v1238
  %v1240 = vpop.f32.mrf.mxu0
  %v1241 = vadd.f32 %v677, %v1240
  %1242 = vmatmul.bf16.gmra.mxu0 %v894
  %v1243 = vpop.f32.mrf.mxu0
  %v1244 = vadd.f32 %v680, %v1243
  %v1245 = vpop.f32.mrf.mxu0
  %v1246 = vadd.f32 %v682, %v1245
  %1247 = vmatmul.bf16.gmra.mxu0 %v897
  %v1248 = vpop.f32.mrf.mxu0
  %v1249 = vadd.f32 %v685, %v1248
  %v1250 = vpop.f32.mrf.mxu0
  %v1251 = vadd.f32 %v687, %v1250
  %1252 = vmatmul.bf16.gmra.mxu0 %v900
  %v1253 = vpop.f32.mrf.mxu0
  %v1254 = vadd.f32 %v690, %v1253
  %v1255 = vpop.f32.mrf.mxu0
  %v1256 = vadd.f32 %v692, %v1255
  %1257 = vdwg.mxu0
  %v1258 = vld [vmem:[%s4] sm:$0xf]
  %v1260 = vperm.slane %v1258, 0
  %v1261 = vperm.slane %v1258, 1
  %v1262 = vperm.slane %v1258, 2
  %v1263 = vperm.slane %v1258, 3
  %v1268 = vadd.f32 %v912, %v1260
  %v1269 = vadd.f32 %v1001, %v1261
  %v1270 = vadd.f32 %v1090, %v1262
  %v1271 = vadd.f32 %v1179, %v1263
  %v1272 = vadd.f32 %v914, %v1260
  %v1273 = vadd.f32 %v1003, %v1261
  %v1274 = vadd.f32 %v1092, %v1262
  %v1275 = vadd.f32 %v1181, %v1263
  %v1276 = vadd.f32 %v917, %v1260
  %v1277 = vadd.f32 %v1006, %v1261
  %v1278 = vadd.f32 %v1095, %v1262
  %v1279 = vadd.f32 %v1184, %v1263
  %v1280 = vadd.f32 %v919, %v1260
  %v1281 = vadd.f32 %v1008, %v1261
  %v1282 = vadd.f32 %v1097, %v1262
  %v1283 = vadd.f32 %v1186, %v1263
  %v1284 = vadd.f32 %v922, %v1260
  %v1285 = vadd.f32 %v1011, %v1261
  %v1286 = vadd.f32 %v1100, %v1262
  %v1287 = vadd.f32 %v1189, %v1263
  %v1288 = vadd.f32 %v924, %v1260
  %v1289 = vadd.f32 %v1013, %v1261
  %v1290 = vadd.f32 %v1102, %v1262
  %v1291 = vadd.f32 %v1191, %v1263
  %v1292 = vadd.f32 %v927, %v1260
  %v1293 = vadd.f32 %v1016, %v1261
  %v1294 = vadd.f32 %v1105, %v1262
  %v1295 = vadd.f32 %v1194, %v1263
  %v1296 = vadd.f32 %v929, %v1260
  %v1297 = vadd.f32 %v1018, %v1261
  %v1298 = vadd.f32 %v1107, %v1262
  %v1299 = vadd.f32 %v1196, %v1263
  %v1300 = vadd.f32 %v932, %v1260
  %v1301 = vadd.f32 %v1021, %v1261
  %v1302 = vadd.f32 %v1110, %v1262
  %v1303 = vadd.f32 %v1199, %v1263
  %v1304 = vadd.f32 %v934, %v1260
  %v1305 = vadd.f32 %v1023, %v1261
  %v1306 = vadd.f32 %v1112, %v1262
  %v1307 = vadd.f32 %v1201, %v1263
  %v1308 = vadd.f32 %v937, %v1260
  %v1309 = vadd.f32 %v1026, %v1261
  %v1310 = vadd.f32 %v1115, %v1262
  %v1311 = vadd.f32 %v1204, %v1263
  %v1312 = vadd.f32 %v939, %v1260
  %v1313 = vadd.f32 %v1028, %v1261
  %v1314 = vadd.f32 %v1117, %v1262
  %v1315 = vadd.f32 %v1206, %v1263
  %v1316 = vadd.f32 %v942, %v1260
  %v1317 = vadd.f32 %v1031, %v1261
  %v1318 = vadd.f32 %v1120, %v1262
  %v1319 = vadd.f32 %v1209, %v1263
  %v1320 = vadd.f32 %v944, %v1260
  %v1321 = vadd.f32 %v1033, %v1261
  %v1322 = vadd.f32 %v1122, %v1262
  %v1323 = vadd.f32 %v1211, %v1263
  %v1324 = vadd.f32 %v947, %v1260
  %v1325 = vadd.f32 %v1036, %v1261
  %v1326 = vadd.f32 %v1125, %v1262
  %v1327 = vadd.f32 %v1214, %v1263
  %v1328 = vadd.f32 %v949, %v1260
  %v1329 = vadd.f32 %v1038, %v1261
  %v1330 = vadd.f32 %v1127, %v1262
  %v1331 = vadd.f32 %v1216, %v1263
  %v1332 = vadd.f32 %v952, %v1260
  %v1333 = vadd.f32 %v1041, %v1261
  %v1334 = vadd.f32 %v1130, %v1262
  %v1335 = vadd.f32 %v1219, %v1263
  %v1336 = vadd.f32 %v954, %v1260
  %v1337 = vadd.f32 %v1043, %v1261
  %v1338 = vadd.f32 %v1132, %v1262
  %v1339 = vadd.f32 %v1221, %v1263
  %v1340 = vadd.f32 %v957, %v1260
  %v1341 = vadd.f32 %v1046, %v1261
  %v1342 = vadd.f32 %v1135, %v1262
  %v1343 = vadd.f32 %v1224, %v1263
  %v1344 = vadd.f32 %v959, %v1260
  %v1345 = vadd.f32 %v1048, %v1261
  %v1346 = vadd.f32 %v1137, %v1262
  %v1347 = vadd.f32 %v1226, %v1263
  %v1348 = vadd.f32 %v962, %v1260
  %v1349 = vadd.f32 %v1051, %v1261
  %v1350 = vadd.f32 %v1140, %v1262
  %v1351 = vadd.f32 %v1229, %v1263
  %v1352 = vadd.f32 %v964, %v1260
  %v1353 = vadd.f32 %v1053, %v1261
  %v1354 = vadd.f32 %v1142, %v1262
  %v1355 = vadd.f32 %v1231, %v1263
  %v1356 = vadd.f32 %v967, %v1260
  %v1357 = vadd.f32 %v1056, %v1261
  %v1358 = vadd.f32 %v1145, %v1262
  %v1359 = vadd.f32 %v1234, %v1263
  %v1360 = vadd.f32 %v969, %v1260
  %v1361 = vadd.f32 %v1058, %v1261
  %v1362 = vadd.f32 %v1147, %v1262
  %v1363 = vadd.f32 %v1236, %v1263
  %v1364 = vadd.f32 %v972, %v1260
  %v1365 = vadd.f32 %v1061, %v1261
  %v1366 = vadd.f32 %v1150, %v1262
  %v1367 = vadd.f32 %v1239, %v1263
  %v1368 = vadd.f32 %v974, %v1260
  %v1369 = vadd.f32 %v1063, %v1261
  %v1370 = vadd.f32 %v1152, %v1262
  %v1371 = vadd.f32 %v1241, %v1263
  %v1372 = vadd.f32 %v977, %v1260
  %v1373 = vadd.f32 %v1066, %v1261
  %v1374 = vadd.f32 %v1155, %v1262
  %v1375 = vadd.f32 %v1244, %v1263
  %v1376 = vadd.f32 %v979, %v1260
  %v1377 = vadd.f32 %v1068, %v1261
  %v1378 = vadd.f32 %v1157, %v1262
  %v1379 = vadd.f32 %v1246, %v1263
  %v1380 = vadd.f32 %v982, %v1260
  %v1381 = vadd.f32 %v1071, %v1261
  %v1382 = vadd.f32 %v1160, %v1262
  %v1383 = vadd.f32 %v1249, %v1263
  %v1384 = vadd.f32 %v984, %v1260
  %v1385 = vadd.f32 %v1073, %v1261
  %v1386 = vadd.f32 %v1162, %v1262
  %v1387 = vadd.f32 %v1251, %v1263
  %v1388 = vadd.f32 %v987, %v1260
  %v1389 = vadd.f32 %v1076, %v1261
  %v1390 = vadd.f32 %v1165, %v1262
  %v1391 = vadd.f32 %v1254, %v1263
  %v1392 = vadd.f32 %v989, %v1260
  %v1393 = vadd.f32 %v1078, %v1261
  %v1394 = vadd.f32 %v1167, %v1262
  %v1395 = vadd.f32 %v1256, %v1263
  %v1396 = vmax.f32 %v1268, 0.0
  %v1397 = vmax.f32 %v1269, 0.0
  %v1398 = vmax.f32 %v1270, 0.0
  %v1399 = vmax.f32 %v1271, 0.0
  %v1400 = vmax.f32 %v1272, 0.0
  %v1401 = vmax.f32 %v1273, 0.0
  %v1402 = vmax.f32 %v1274, 0.0
  %v1403 = vmax.f32 %v1275, 0.0
  %v1404 = vmax.f32 %v1276, 0.0
  %v1405 = vmax.f32 %v1277, 0.0
  %v1406 = vmax.f32 %v1278, 0.0
  %v1407 = vmax.f32 %v1279, 0.0
  %v1408 = vmax.f32 %v1280, 0.0
  %v1409 = vmax.f32 %v1281, 0.0
  %v1410 = vmax.f32 %v1282, 0.0
  %v1411 = vmax.f32 %v1283, 0.0
  %v1412 = vmax.f32 %v1284, 0.0
  %v1413 = vmax.f32 %v1285, 0.0
  %v1414 = vmax.f32 %v1286, 0.0
  %v1415 = vmax.f32 %v1287, 0.0
  %v1416 = vmax.f32 %v1288, 0.0
  %v1417 = vmax.f32 %v1289, 0.0
  %v1418 = vmax.f32 %v1290, 0.0
  %v1419 = vmax.f32 %v1291, 0.0
  %v1420 = vmax.f32 %v1292, 0.0
  %v1421 = vmax.f32 %v1293, 0.0
  %v1422 = vmax.f32 %v1294, 0.0
  %v1423 = vmax.f32 %v1295, 0.0
  %v1424 = vmax.f32 %v1296, 0.0
  %v1425 = vmax.f32 %v1297, 0.0
  %v1426 = vmax.f32 %v1298, 0.0
  %v1427 = vmax.f32 %v1299, 0.0
  %v1428 = vmax.f32 %v1300, 0.0
  %v1429 = vmax.f32 %v1301, 0.0
  %v1430 = vmax.f32 %v1302, 0.0
  %v1431 = vmax.f32 %v1303, 0.0
  %v1432 = vmax.f32 %v1304, 0.0
  %v1433 = vmax.f32 %v1305, 0.0
  %v1434 = vmax.f32 %v1306, 0.0
  %v1435 = vmax.f32 %v1307, 0.0
  %v1436 = vmax.f32 %v1308, 0.0
  %v1437 = vmax.f32 %v1309, 0.0
  %v1438 = vmax.f32 %v1310, 0.0
  %v1439 = vmax.f32 %v1311, 0.0
  %v1440 = vmax.f32 %v1312, 0.0
  %v1441 = vmax.f32 %v1313, 0.0
  %v1442 = vmax.f32 %v1314, 0.0
  %v1443 = vmax.f32 %v1315, 0.0
  %v1444 = vmax.f32 %v1316, 0.0
  %v1445 = vmax.f32 %v1317, 0.0
  %v1446 = vmax.f32 %v1318, 0.0
  %v1447 = vmax.f32 %v1319, 0.0
  %v1448 = vmax.f32 %v1320, 0.0
  %v1449 = vmax.f32 %v1321, 0.0
  %v1450 = vmax.f32 %v1322, 0.0
  %v1451 = vmax.f32 %v1323, 0.0
  %v1452 = vmax.f32 %v1324, 0.0
  %v1453 = vmax.f32 %v1325, 0.0
  %v1454 = vmax.f32 %v1326, 0.0
  %v1455 = vmax.f32 %v1327, 0.0
  %v1456 = vmax.f32 %v1328, 0.0
  %v1457 = vmax.f32 %v1329, 0.0
  %v1458 = vmax.f32 %v1330, 0.0
  %v1459 = vmax.f32 %v1331, 0.0
  %v1460 = vmax.f32 %v1332, 0.0
  %v1461 = vmax.f32 %v1333, 0.0
  %v1462 = vmax.f32 %v1334, 0.0
  %v1463 = vmax.f32 %v1335, 0.0
  %v1464 = vmax.f32 %v1336, 0.0
  %v1465 = vmax.f32 %v1337, 0.0
  %v1466 = vmax.f32 %v1338, 0.0
  %v1467 = vmax.f32 %v1339, 0.0
  %v1468 = vmax.f32 %v1340, 0.0
  %v1469 = vmax.f32 %v1341, 0.0
  %v1470 = vmax.f32 %v1342, 0.0
  %v1471 = vmax.f32 %v1343, 0.0
  %v1472 = vmax.f32 %v1344, 0.0
  %v1473 = vmax.f32 %v1345, 0.0
  %v1474 = vmax.f32 %v1346, 0.0
  %v1475 = vmax.f32 %v1347, 0.0
  %v1476 = vmax.f32 %v1348, 0.0
  %v1477 = vmax.f32 %v1349, 0.0
  %v1478 = vmax.f32 %v1350, 0.0
  %v1479 = vmax.f32 %v1351, 0.0
  %v1480 = vmax.f32 %v1352, 0.0
  %v1481 = vmax.f32 %v1353, 0.0
  %v1482 = vmax.f32 %v1354, 0.0
  %v1483 = vmax.f32 %v1355, 0.0
  %v1484 = vmax.f32 %v1356, 0.0
  %v1485 = vmax.f32 %v1357, 0.0
  %v1486 = vmax.f32 %v1358, 0.0
  %v1487 = vmax.f32 %v1359, 0.0
  %v1488 = vmax.f32 %v1360, 0.0
  %v1489 = vmax.f32 %v1361, 0.0
  %v1490 = vmax.f32 %v1362, 0.0
  %v1491 = vmax.f32 %v1363, 0.0
  %v1492 = vmax.f32 %v1364, 0.0
  %v1493 = vmax.f32 %v1365, 0.0
  %v1494 = vmax.f32 %v1366, 0.0
  %v1495 = vmax.f32 %v1367, 0.0
  %v1496 = vmax.f32 %v1368, 0.0
  %v1497 = vmax.f32 %v1369, 0.0
  %v1498 = vmax.f32 %v1370, 0.0
  %v1499 = vmax.f32 %v1371, 0.0
  %v1500 = vmax.f32 %v1372, 0.0
  %v1501 = vmax.f32 %v1373, 0.0
  %v1502 = vmax.f32 %v1374, 0.0
  %v1503 = vmax.f32 %v1375, 0.0
  %v1504 = vmax.f32 %v1376, 0.0
  %v1505 = vmax.f32 %v1377, 0.0
  %v1506 = vmax.f32 %v1378, 0.0
  %v1507 = vmax.f32 %v1379, 0.0
  %v1508 = vmax.f32 %v1380, 0.0
  %v1509 = vmax.f32 %v1381, 0.0
  %v1510 = vmax.f32 %v1382, 0.0
  %v1511 = vmax.f32 %v1383, 0.0
  %v1512 = vmax.f32 %v1384, 0.0
  %v1513 = vmax.f32 %v1385, 0.0
  %v1514 = vmax.f32 %v1386, 0.0
  %v1515 = vmax.f32 %v1387, 0.0
  %v1516 = vmax.f32 %v1388, 0.0
  %v1517 = vmax.f32 %v1389, 0.0
  %v1518 = vmax.f32 %v1390, 0.0
  %v1519 = vmax.f32 %v1391, 0.0
  %v1520 = vmax.f32 %v1392, 0.0
  %v1521 = vmax.f32 %v1393, 0.0
  %v1522 = vmax.f32 %v1394, 0.0
  %v1523 = vmax.f32 %v1395, 0.0
  %v1524 = vpack.c.bf16 %v1400, %v1396
  %v1525 = vpack.c.bf16 %v1401, %v1397
  %v1526 = vpack.c.bf16 %v1402, %v1398
  %v1527 = vpack.c.bf16 %v1403, %v1399
  %v1528 = vpack.c.bf16 %v1408, %v1404
  %v1529 = vpack.c.bf16 %v1409, %v1405
  %v1530 = vpack.c.bf16 %v1410, %v1406
  %v1531 = vpack.c.bf16 %v1411, %v1407
  %v1532 = vpack.c.bf16 %v1416, %v1412
  %v1533 = vpack.c.bf16 %v1417, %v1413
  %v1534 = vpack.c.bf16 %v1418, %v1414
  %v1535 = vpack.c.bf16 %v1419, %v1415
  %v1536 = vpack.c.bf16 %v1424, %v1420
  %v1537 = vpack.c.bf16 %v1425, %v1421
  %v1538 = vpack.c.bf16 %v1426, %v1422
  %v1539 = vpack.c.bf16 %v1427, %v1423
  %v1540 = vpack.c.bf16 %v1432, %v1428
  %v1541 = vpack.c.bf16 %v1433, %v1429
  %v1542 = vpack.c.bf16 %v1434, %v1430
  %v1543 = vpack.c.bf16 %v1435, %v1431
  %v1544 = vpack.c.bf16 %v1440, %v1436
  %v1545 = vpack.c.bf16 %v1441, %v1437
  %v1546 = vpack.c.bf16 %v1442, %v1438
  %v1547 = vpack.c.bf16 %v1443, %v1439
  %v1548 = vpack.c.bf16 %v1448, %v1444
  %v1549 = vpack.c.bf16 %v1449, %v1445
  %v1550 = vpack.c.bf16 %v1450, %v1446
  %v1551 = vpack.c.bf16 %v1451, %v1447
  %v1552 = vpack.c.bf16 %v1456, %v1452
  %v1553 = vpack.c.bf16 %v1457, %v1453
  %v1554 = vpack.c.bf16 %v1458, %v1454
  %v1555 = vpack.c.bf16 %v1459, %v1455
  %v1556 = vpack.c.bf16 %v1464, %v1460
  %v1557 = vpack.c.bf16 %v1465, %v1461
  %v1558 = vpack.c.bf16 %v1466, %v1462
  %v1559 = vpack.c.bf16 %v1467, %v1463
  %v1560 = vpack.c.bf16 %v1472, %v1468
  %v1561 = vpack.c.bf16 %v1473, %v1469
  %v1562 = vpack.c.bf16 %v1474, %v1470
  %v1563 = vpack.c.bf16 %v1475, %v1471
  %v1564 = vpack.c.bf16 %v1480, %v1476
  %v1565 = vpack.c.bf16 %v1481, %v1477
  %v1566 = vpack.c.bf16 %v1482, %v1478
  %v1567 = vpack.c.bf16 %v1483, %v1479
  %v1568 = vpack.c.bf16 %v1488, %v1484
  %v1569 = vpack.c.bf16 %v1489, %v1485
  %v1570 = vpack.c.bf16 %v1490, %v1486
  %v1571 = vpack.c.bf16 %v1491, %v1487
  %v1572 = vpack.c.bf16 %v1496, %v1492
  %v1573 = vpack.c.bf16 %v1497, %v1493
  %v1574 = vpack.c.bf16 %v1498, %v1494
  %v1575 = vpack.c.bf16 %v1499, %v1495
  %v1576 = vpack.c.bf16 %v1504, %v1500
  %v1577 = vpack.c.bf16 %v1505, %v1501
  %v1578 = vpack.c.bf16 %v1506, %v1502
  %v1579 = vpack.c.bf16 %v1507, %v1503
  %v1580 = vpack.c.bf16 %v1512, %v1508
  %v1581 = vpack.c.bf16 %v1513, %v1509
  %v1582 = vpack.c.bf16 %v1514, %v1510
  %v1583 = vpack.c.bf16 %v1515, %v1511
  %v1584 = vpack.c.bf16 %v1520, %v1516
  %v1585 = vpack.c.bf16 %v1521, %v1517
  %v1586 = vpack.c.bf16 %v1522, %v1518
  %v1587 = vpack.c.bf16 %v1523, %v1519
  %v1588 = vld [vmem:[%s5] sm:$0xff]
  %v1589 = vld [vmem:[%s5 + $0x8] sm:$0xff]
  %v1590 = vld [vmem:[%s5 + $0x10] sm:$0xff]
  %v1591 = vld [vmem:[%s5 + $0x18] sm:$0xff]
  %v1592 = vld [vmem:[%s5 + $0x20] sm:$0xff]
  %v1593 = vld [vmem:[%s5 + $0x28] sm:$0xff]
  %v1594 = vld [vmem:[%s5 + $0x30] sm:$0xff]
  %v1595 = vld [vmem:[%s5 + $0x38] sm:$0xff]
  %v1596 = vld [vmem:[%s5 + $0x40] sm:$0xff]
  %v1597 = vld [vmem:[%s5 + $0x48] sm:$0xff]
  %v1598 = vld [vmem:[%s5 + $0x50] sm:$0xff]
  %v1599 = vld [vmem:[%s5 + $0x58] sm:$0xff]
  %v1600 = vld [vmem:[%s5 + $0x60] sm:$0xff]
  %v1601 = vld [vmem:[%s5 + $0x68] sm:$0xff]
  %v1602 = vld [vmem:[%s5 + $0x70] sm:$0xff]
  %v1603 = vld [vmem:[%s5 + $0x78] sm:$0xff]
  %v1604 = vld [vmem:[%s5 + $0x80] sm:$0xff]
  %v1605 = vld [vmem:[%s5 + $0x88] sm:$0xff]
  %v1606 = vld [vmem:[%s5 + $0x90] sm:$0xff]
  %v1607 = vld [vmem:[%s5 + $0x98] sm:$0xff]
  %v1608 = vld [vmem:[%s5 + $0xa0] sm:$0xff]
  %v1609 = vld [vmem:[%s5 + $0xa8] sm:$0xff]
  %v1610 = vld [vmem:[%s5 + $0xb0] sm:$0xff]
  %v1611 = vld [vmem:[%s5 + $0xb8] sm:$0xff]
  %v1612 = vld [vmem:[%s5 + $0xc0] sm:$0xff]
  %v1613 = vld [vmem:[%s5 + $0xc8] sm:$0xff]
  %v1614 = vld [vmem:[%s5 + $0xd0] sm:$0xff]
  %v1615 = vld [vmem:[%s5 + $0xd8] sm:$0xff]
  %v1616 = vld [vmem:[%s5 + $0xe0] sm:$0xff]
  %v1617 = vld [vmem:[%s5 + $0xe8] sm:$0xff]
  %v1618 = vld [vmem:[%s5 + $0xf0] sm:$0xff]
  %v1619 = vld [vmem:[%s5 + $0xf8] sm:$0xff]
  %v1620 = vld [vmem:[%s5 + $0x100] sm:$0xff]
  %v1621 = vld [vmem:[%s5 + $0x108] sm:$0xff]
  %v1622 = vld [vmem:[%s5 + $0x110] sm:$0xff]
  %v1623 = vld [vmem:[%s5 + $0x118] sm:$0xff]
  %v1624 = vld [vmem:[%s5 + $0x120] sm:$0xff]
  %v1625 = vld [vmem:[%s5 + $0x128] sm:$0xff]
  %v1626 = vld [vmem:[%s5 + $0x130] sm:$0xff]
  %v1627 = vld [vmem:[%s5 + $0x138] sm:$0xff]
  %v1628 = vld [vmem:[%s5 + $0x140] sm:$0xff]
  %v1629 = vld [vmem:[%s5 + $0x148] sm:$0xff]
  %v1630 = vld [vmem:[%s5 + $0x150] sm:$0xff]
  %v1631 = vld [vmem:[%s5 + $0x158] sm:$0xff]
  %v1632 = vld [vmem:[%s5 + $0x160] sm:$0xff]
  %v1633 = vld [vmem:[%s5 + $0x168] sm:$0xff]
  %v1634 = vld [vmem:[%s5 + $0x170] sm:$0xff]
  %v1635 = vld [vmem:[%s5 + $0x178] sm:$0xff]
  %v1636 = vld [vmem:[%s5 + $0x180] sm:$0xff]
  %v1637 = vld [vmem:[%s5 + $0x188] sm:$0xff]
  %v1638 = vld [vmem:[%s5 + $0x190] sm:$0xff]
  %v1639 = vld [vmem:[%s5 + $0x198] sm:$0xff]
  %v1640 = vld [vmem:[%s5 + $0x1a0] sm:$0xff]
  %v1641 = vld [vmem:[%s5 + $0x1a8] sm:$0xff]
  %v1642 = vld [vmem:[%s5 + $0x1b0] sm:$0xff]
  %v1643 = vld [vmem:[%s5 + $0x1b8] sm:$0xff]
  %v1644 = vld [vmem:[%s5 + $0x1c0] sm:$0xff]
  %v1645 = vld [vmem:[%s5 + $0x1c8] sm:$0xff]
  %v1646 = vld [vmem:[%s5 + $0x1d0] sm:$0xff]
  %v1647 = vld [vmem:[%s5 + $0x1d8] sm:$0xff]
  %v1648 = vld [vmem:[%s5 + $0x1e0] sm:$0xff]
  %v1649 = vld [vmem:[%s5 + $0x1e8] sm:$0xff]
  %v1650 = vld [vmem:[%s5 + $0x1f0] sm:$0xff]
  %v1651 = vld [vmem:[%s5 + $0x1f8] sm:$0xff]
  %v1652 = vld [vmem:[%s6] sm:$0x3]
  %v1654 = vperm.slane %v1652, 0
  %v1655 = vperm.slane %v1652, 1
  %v1722 = vunpack.c.l.b16 %v1588
  %v1723 = vunpack.c.h.b16 %v1588
  %v1724 = vunpack.c.l.b16 %v1589
  %v1725 = vunpack.c.h.b16 %v1589
  %v1726 = vunpack.c.l.b16 %v1590
  %v1727 = vunpack.c.h.b16 %v1590
  %v1728 = vunpack.c.l.b16 %v1591
  %v1729 = vunpack.c.h.b16 %v1591
  %v1730 = vunpack.c.l.b16 %v1592
  %v1731 = vunpack.c.h.b16 %v1592
  %v1732 = vunpack.c.l.b16 %v1593
  %v1733 = vunpack.c.h.b16 %v1593
  %v1734 = vunpack.c.l.b16 %v1594
  %v1735 = vunpack.c.h.b16 %v1594
  %v1736 = vunpack.c.l.b16 %v1595
  %v1737 = vunpack.c.h.b16 %v1595
  %v1738 = vunpack.c.l.b16 %v1596
  %v1739 = vunpack.c.h.b16 %v1596
  %v1740 = vunpack.c.l.b16 %v1597
  %v1741 = vunpack.c.h.b16 %v1597
  %v1742 = vunpack.c.l.b16 %v1598
  %v1743 = vunpack.c.h.b16 %v1598
  %v1744 = vunpack.c.l.b16 %v1599
  %v1745 = vunpack.c.h.b16 %v1599
  %v1746 = vunpack.c.l.b16 %v1600
  %v1747 = vunpack.c.h.b16 %v1600
  %v1748 = vunpack.c.l.b16 %v1601
  %v1749 = vunpack.c.h.b16 %v1601
  %v1750 = vunpack.c.l.b16 %v1602
  %v1751 = vunpack.c.h.b16 %v1602
  %v1752 = vunpack.c.l.b16 %v1603
  %v1753 = vunpack.c.h.b16 %v1603
  %v1754 = vunpack.c.l.b16 %v1604
  %v1755 = vunpack.c.h.b16 %v1604
  %v1756 = vunpack.c.l.b16 %v1605
  %v1757 = vunpack.c.h.b16 %v1605
  %v1758 = vunpack.c.l.b16 %v1606
  %v1759 = vunpack.c.h.b16 %v1606
  %v1760 = vunpack.c.l.b16 %v1607
  %v1761 = vunpack.c.h.b16 %v1607
  %v1762 = vunpack.c.l.b16 %v1608
  %v1763 = vunpack.c.h.b16 %v1608
  %v1764 = vunpack.c.l.b16 %v1609
  %v1765 = vunpack.c.h.b16 %v1609
  %v1766 = vunpack.c.l.b16 %v1610
  %v1767 = vunpack.c.h.b16 %v1610
  %v1768 = vunpack.c.l.b16 %v1611
  %v1769 = vunpack.c.h.b16 %v1611
  %v1770 = vunpack.c.l.b16 %v1612
  %v1771 = vunpack.c.h.b16 %v1612
  %v1772 = vunpack.c.l.b16 %v1613
  %v1773 = vunpack.c.h.b16 %v1613
  %v1774 = vunpack.c.l.b16 %v1614
  %v1775 = vunpack.c.h.b16 %v1614
  %v1776 = vunpack.c.l.b16 %v1615
  %v1777 = vunpack.c.h.b16 %v1615
  %v1778 = vunpack.c.l.b16 %v1616
  %v1779 = vunpack.c.h.b16 %v1616
  %v1780 = vunpack.c.l.b16 %v1617
  %v1781 = vunpack.c.h.b16 %v1617
  %v1782 = vunpack.c.l.b16 %v1618
  %v1783 = vunpack.c.h.b16 %v1618
  %v1784 = vunpack.c.l.b16 %v1619
  %v1785 = vunpack.c.h.b16 %v1619
  %v1786 = vunpack.c.l.b16 %v1620
  %v1787 = vunpack.c.h.b16 %v1620
  %v1788 = vunpack.c.l.b16 %v1621
  %v1789 = vunpack.c.h.b16 %v1621
  %v1790 = vunpack.c.l.b16 %v1622
  %v1791 = vunpack.c.h.b16 %v1622
  %v1792 = vunpack.c.l.b16 %v1623
  %v1793 = vunpack.c.h.b16 %v1623
  %v1794 = vunpack.c.l.b16 %v1624
  %v1795 = vunpack.c.h.b16 %v1624
  %v1796 = vunpack.c.l.b16 %v1625
  %v1797 = vunpack.c.h.b16 %v1625
  %v1798 = vunpack.c.l.b16 %v1626
  %v1799 = vunpack.c.h.b16 %v1626
  %v1800 = vunpack.c.l.b16 %v1627
  %v1801 = vunpack.c.h.b16 %v1627
  %v1802 = vunpack.c.l.b16 %v1628
  %v1803 = vunpack.c.h.b16 %v1628
  %v1804 = vunpack.c.l.b16 %v1629
  %v1805 = vunpack.c.h.b16 %v1629
  %v1806 = vunpack.c.l.b16 %v1630
  %v1807 = vunpack.c.h.b16 %v1630
  %v1808 = vunpack.c.l.b16 %v1631
  %v1809 = vunpack.c.h.b16 %v1631
  %v1810 = vunpack.c.l.b16 %v1632
  %v1811 = vunpack.c.h.b16 %v1632
  %v1812 = vunpack.c.l.b16 %v1633
  %v1813 = vunpack.c.h.b16 %v1633
  %v1814 = vunpack.c.l.b16 %v1634
  %v1815 = vunpack.c.h.b16 %v1634
  %v1816 = vunpack.c.l.b16 %v1635
  %v1817 = vunpack.c.h.b16 %v1635
  %v1818 = vunpack.c.l.b16 %v1636
  %v1819 = vunpack.c.h.b16 %v1636
  %v1820 = vunpack.c.l.b16 %v1637
  %v1821 = vunpack.c.h.b16 %v1637
  %v1822 = vunpack.c.l.b16 %v1638
  %v1823 = vunpack.c.h.b16 %v1638
  %v1824 = vunpack.c.l.b16 %v1639
  %v1825 = vunpack.c.h.b16 %v1639
  %v1826 = vunpack.c.l.b16 %v1640
  %v1827 = vunpack.c.h.b16 %v1640
  %v1828 = vunpack.c.l.b16 %v1641
  %v1829 = vunpack.c.h.b16 %v1641
  %v1830 = vunpack.c.l.b16 %v1642
  %v1831 = vunpack.c.h.b16 %v1642
  %v1832 = vunpack.c.l.b16 %v1643
  %v1833 = vunpack.c.h.b16 %v1643
  %v1834 = vunpack.c.l.b16 %v1644
  %v1835 = vunpack.c.h.b16 %v1644
  %v1836 = vunpack.c.l.b16 %v1645
  %v1837 = vunpack.c.h.b16 %v1645
  %v1838 = vunpack.c.l.b16 %v1646
  %v1839 = vunpack.c.h.b16 %v1646
  %v1840 = vunpack.c.l.b16 %v1647
  %v1841 = vunpack.c.h.b16 %v1647
  %v1842 = vunpack.c.l.b16 %v1648
  %v1843 = vunpack.c.h.b16 %v1648
  %v1844 = vunpack.c.l.b16 %v1649
  %v1845 = vunpack.c.h.b16 %v1649
  %v1846 = vunpack.c.l.b16 %v1650
  %v1847 = vunpack.c.h.b16 %v1650
  %v1848 = vunpack.c.l.b16 %v1651
  %v1849 = vunpack.c.h.b16 %v1651
  %v1850 = vpack.c.b16 %v1724, %v1722
  %v1851 = vpack.c.b16 %v1725, %v1723
  %v1852 = vpack.c.b16 %v1728, %v1726
  %v1853 = vpack.c.b16 %v1729, %v1727
  %v1854 = vpack.c.b16 %v1732, %v1730
  %v1855 = vpack.c.b16 %v1733, %v1731
  %v1856 = vpack.c.b16 %v1736, %v1734
  %v1857 = vpack.c.b16 %v1737, %v1735
  %v1858 = vpack.c.b16 %v1740, %v1738
  %v1859 = vpack.c.b16 %v1741, %v1739
  %v1860 = vpack.c.b16 %v1744, %v1742
  %v1861 = vpack.c.b16 %v1745, %v1743
  %v1862 = vpack.c.b16 %v1748, %v1746
  %v1863 = vpack.c.b16 %v1749, %v1747
  %v1864 = vpack.c.b16 %v1752, %v1750
  %v1865 = vpack.c.b16 %v1753, %v1751
  %v1866 = vpack.c.b16 %v1756, %v1754
  %v1867 = vpack.c.b16 %v1757, %v1755
  %v1868 = vpack.c.b16 %v1760, %v1758
  %v1869 = vpack.c.b16 %v1761, %v1759
  %v1870 = vpack.c.b16 %v1764, %v1762
  %v1871 = vpack.c.b16 %v1765, %v1763
  %v1872 = vpack.c.b16 %v1768, %v1766
  %v1873 = vpack.c.b16 %v1769, %v1767
  %v1874 = vpack.c.b16 %v1772, %v1770
  %v1875 = vpack.c.b16 %v1773, %v1771
  %v1876 = vpack.c.b16 %v1776, %v1774
  %v1877 = vpack.c.b16 %v1777, %v1775
  %v1878 = vpack.c.b16 %v1780, %v1778
  %v1879 = vpack.c.b16 %v1781, %v1779
  %v1880 = vpack.c.b16 %v1784, %v1782
  %v1881 = vpack.c.b16 %v1785, %v1783
  %v1882 = vpack.c.b16 %v1788, %v1786
  %v1883 = vpack.c.b16 %v1789, %v1787
  %v1884 = vpack.c.b16 %v1792, %v1790
  %v1885 = vpack.c.b16 %v1793, %v1791
  %v1886 = vpack.c.b16 %v1796, %v1794
  %v1887 = vpack.c.b16 %v1797, %v1795
  %v1888 = vpack.c.b16 %v1800, %v1798
  %v1889 = vpack.c.b16 %v1801, %v1799
  %v1890 = vpack.c.b16 %v1804, %v1802
  %v1891 = vpack.c.b16 %v1805, %v1803
  %v1892 = vpack.c.b16 %v1808, %v1806
  %v1893 = vpack.c.b16 %v1809, %v1807
  %v1894 = vpack.c.b16 %v1812, %v1810
  %v1895 = vpack.c.b16 %v1813, %v1811
  %v1896 = vpack.c.b16 %v1816, %v1814
  %v1897 = vpack.c.b16 %v1817, %v1815
  %v1898 = vpack.c.b16 %v1820, %v1818
  %v1899 = vpack.c.b16 %v1821, %v1819
  %v1900 = vpack.c.b16 %v1824, %v1822
  %v1901 = vpack.c.b16 %v1825, %v1823
  %v1902 = vpack.c.b16 %v1828, %v1826
  %v1903 = vpack.c.b16 %v1829, %v1827
  %v1904 = vpack.c.b16 %v1832, %v1830
  %v1905 = vpack.c.b16 %v1833, %v1831
  %v1906 = vpack.c.b16 %v1836, %v1834
  %v1907 = vpack.c.b16 %v1837, %v1835
  %v1908 = vpack.c.b16 %v1840, %v1838
  %v1909 = vpack.c.b16 %v1841, %v1839
  %v1910 = vpack.c.b16 %v1844, %v1842
  %v1911 = vpack.c.b16 %v1845, %v1843
  %v1912 = vpack.c.b16 %v1848, %v1846
  %v1913 = vpack.c.b16 %v1849, %v1847
  %1978 = vmatpush.bf16.msra.mxu0 %v1864
  %1979 = vmatpush.bf16.msra.mxu0 %v1862
  %1980 = vmatpush.bf16.msra.mxu0 %v1860
  %1981 = vmatpush.bf16.msra.mxu0 %v1858
  %1982 = vmatpush.bf16.msra.mxu0 %v1856
  %1983 = vmatpush.bf16.msra.mxu0 %v1854
  %1984 = vmatpush.bf16.msra.mxu0 %v1852
  %1985 = vmatpush.bf16.msra.mxu0 %v1850
  %1986 = vmatmul.bf16.gmra.mxu0 %v1524
  %v1987 = vpop.f32.mrf.mxu0
  %v1988 = vadd.f32 %v1654, %v1987
  %v1989 = vpop.f32.mrf.mxu0
  %v1990 = vadd.f32 %v1654, %v1989
  %1991 = vmatmul.bf16.gmra.mxu0 %v1528
  %v1992 = vpop.f32.mrf.mxu0
  %v1993 = vadd.f32 %v1654, %v1992
  %v1994 = vpop.f32.mrf.mxu0
  %v1995 = vadd.f32 %v1654, %v1994
  %1996 = vmatmul.bf16.gmra.mxu0 %v1532
  %v1997 = vpop.f32.mrf.mxu0
  %v1998 = vadd.f32 %v1654, %v1997
  %v1999 = vpop.f32.mrf.mxu0
  %v2000 = vadd.f32 %v1654, %v1999
  %2001 = vmatmul.bf16.gmra.mxu0 %v1536
  %v2002 = vpop.f32.mrf.mxu0
  %v2003 = vadd.f32 %v1654, %v2002
  %v2004 = vpop.f32.mrf.mxu0
  %v2005 = vadd.f32 %v1654, %v2004
  %2006 = vmatmul.bf16.gmra.mxu0 %v1540
  %v2007 = vpop.f32.mrf.mxu0
  %v2008 = vadd.f32 %v1654, %v2007
  %v2009 = vpop.f32.mrf.mxu0
  %v2010 = vadd.f32 %v1654, %v2009
  %2011 = vmatmul.bf16.gmra.mxu0 %v1544
  %v2012 = vpop.f32.mrf.mxu0
  %v2013 = vadd.f32 %v1654, %v2012
  %v2014 = vpop.f32.mrf.mxu0
  %v2015 = vadd.f32 %v1654, %v2014
  %2016 = vmatmul.bf16.gmra.mxu0 %v1548
  %v2017 = vpop.f32.mrf.mxu0
  %v2018 = vadd.f32 %v1654, %v2017
  %v2019 = vpop.f32.mrf.mxu0
  %v2020 = vadd.f32 %v1654, %v2019
  %2021 = vmatmul.bf16.gmra.mxu0 %v1552
  %v2022 = vpop.f32.mrf.mxu0
  %v2023 = vadd.f32 %v1654, %v2022
  %v2024 = vpop.f32.mrf.mxu0
  %v2025 = vadd.f32 %v1654, %v2024
  %2026 = vmatmul.bf16.gmra.mxu0 %v1556
  %v2027 = vpop.f32.mrf.mxu0
  %v2028 = vadd.f32 %v1654, %v2027
  %v2029 = vpop.f32.mrf.mxu0
  %v2030 = vadd.f32 %v1654, %v2029
  %2031 = vmatmul.bf16.gmra.mxu0 %v1560
  %v2032 = vpop.f32.mrf.mxu0
  %v2033 = vadd.f32 %v1654, %v2032
  %v2034 = vpop.f32.mrf.mxu0
  %v2035 = vadd.f32 %v1654, %v2034
  %2036 = vmatmul.bf16.gmra.mxu0 %v1564
  %v2037 = vpop.f32.mrf.mxu0
  %v2038 = vadd.f32 %v1654, %v2037
  %v2039 = vpop.f32.mrf.mxu0
  %v2040 = vadd.f32 %v1654, %v2039
  %2041 = vmatmul.bf16.gmra.mxu0 %v1568
  %v2042 = vpop.f32.mrf.mxu0
  %v2043 = vadd.f32 %v1654, %v2042
  %v2044 = vpop.f32.mrf.mxu0
  %v2045 = vadd.f32 %v1654, %v2044
  %2046 = vmatmul.bf16.gmra.mxu0 %v1572
  %v2047 = vpop.f32.mrf.mxu0
  %v2048 = vadd.f32 %v1654, %v2047
  %v2049 = vpop.f32.mrf.mxu0
  %v2050 = vadd.f32 %v1654, %v2049
  %2051 = vmatmul.bf16.gmra.mxu0 %v1576
  %v2052 = vpop.f32.mrf.mxu0
  %v2053 = vadd.f32 %v1654, %v2052
  %v2054 = vpop.f32.mrf.mxu0
  %v2055 = vadd.f32 %v1654, %v2054
  %2056 = vmatmul.bf16.gmra.mxu0 %v1580
  %v2057 = vpop.f32.mrf.mxu0
  %v2058 = vadd.f32 %v1654, %v2057
  %v2059 = vpop.f32.mrf.mxu0
  %v2060 = vadd.f32 %v1654, %v2059
  %2061 = vmatmul.bf16.gmra.mxu0 %v1584
  %v2062 = vpop.f32.mrf.mxu0
  %v2063 = vadd.f32 %v1654, %v2062
  %v2064 = vpop.f32.mrf.mxu0
  %v2065 = vadd.f32 %v1654, %v2064
  %2066 = vdwg.mxu0
  %2067 = vmatpush.bf16.msra.mxu0 %v1880
  %2068 = vmatpush.bf16.msra.mxu0 %v1878
  %2069 = vmatpush.bf16.msra.mxu0 %v1876
  %2070 = vmatpush.bf16.msra.mxu0 %v1874
  %2071 = vmatpush.bf16.msra.mxu0 %v1872
  %2072 = vmatpush.bf16.msra.mxu0 %v1870
  %2073 = vmatpush.bf16.msra.mxu0 %v1868
  %2074 = vmatpush.bf16.msra.mxu0 %v1866
  %2075 = vmatmul.bf16.gmra.mxu0 %v1525
  %v2076 = vpop.f32.mrf.mxu0
  %v2077 = vadd.f32 %v1988, %v2076
  %v2078 = vpop.f32.mrf.mxu0
  %v2079 = vadd.f32 %v1990, %v2078
  %2080 = vmatmul.bf16.gmra.mxu0 %v1529
  %v2081 = vpop.f32.mrf.mxu0
  %v2082 = vadd.f32 %v1993, %v2081
  %v2083 = vpop.f32.mrf.mxu0
  %v2084 = vadd.f32 %v1995, %v2083
  %2085 = vmatmul.bf16.gmra.mxu0 %v1533
  %v2086 = vpop.f32.mrf.mxu0
  %v2087 = vadd.f32 %v1998, %v2086
  %v2088 = vpop.f32.mrf.mxu0
  %v2089 = vadd.f32 %v2000, %v2088
  %2090 = vmatmul.bf16.gmra.mxu0 %v1537
  %v2091 = vpop.f32.mrf.mxu0
  %v2092 = vadd.f32 %v2003, %v2091
  %v2093 = vpop.f32.mrf.mxu0
  %v2094 = vadd.f32 %v2005, %v2093
  %2095 = vmatmul.bf16.gmra.mxu0 %v1541
  %v2096 = vpop.f32.mrf.mxu0
  %v2097 = vadd.f32 %v2008, %v2096
  %v2098 = vpop.f32.mrf.mxu0
  %v2099 = vadd.f32 %v2010, %v2098
  %2100 = vmatmul.bf16.gmra.mxu0 %v1545
  %v2101 = vpop.f32.mrf.mxu0
  %v2102 = vadd.f32 %v2013, %v2101
  %v2103 = vpop.f32.mrf.mxu0
  %v2104 = vadd.f32 %v2015, %v2103
  %2105 = vmatmul.bf16.gmra.mxu0 %v1549
  %v2106 = vpop.f32.mrf.mxu0
  %v2107 = vadd.f32 %v2018, %v2106
  %v2108 = vpop.f32.mrf.mxu0
  %v2109 = vadd.f32 %v2020, %v2108
  %2110 = vmatmul.bf16.gmra.mxu0 %v1553
  %v2111 = vpop.f32.mrf.mxu0
  %v2112 = vadd.f32 %v2023, %v2111
  %v2113 = vpop.f32.mrf.mxu0
  %v2114 = vadd.f32 %v2025, %v2113
  %2115 = vmatmul.bf16.gmra.mxu0 %v1557
  %v2116 = vpop.f32.mrf.mxu0
  %v2117 = vadd.f32 %v2028, %v2116
  %v2118 = vpop.f32.mrf.mxu0
  %v2119 = vadd.f32 %v2030, %v2118
  %2120 = vmatmul.bf16.gmra.mxu0 %v1561
  %v2121 = vpop.f32.mrf.mxu0
  %v2122 = vadd.f32 %v2033, %v2121
  %v2123 = vpop.f32.mrf.mxu0
  %v2124 = vadd.f32 %v2035, %v2123
  %2125 = vmatmul.bf16.gmra.mxu0 %v1565
  %v2126 = vpop.f32.mrf.mxu0
  %v2127 = vadd.f32 %v2038, %v2126
  %v2128 = vpop.f32.mrf.mxu0
  %v2129 = vadd.f32 %v2040, %v2128
  %2130 = vmatmul.bf16.gmra.mxu0 %v1569
  %v2131 = vpop.f32.mrf.mxu0
  %v2132 = vadd.f32 %v2043, %v2131
  %v2133 = vpop.f32.mrf.mxu0
  %v2134 = vadd.f32 %v2045, %v2133
  %2135 = vmatmul.bf16.gmra.mxu0 %v1573
  %v2136 = vpop.f32.mrf.mxu0
  %v2137 = vadd.f32 %v2048, %v2136
  %v2138 = vpop.f32.mrf.mxu0
  %v2139 = vadd.f32 %v2050, %v2138
  %2140 = vmatmul.bf16.gmra.mxu0 %v1577
  %v2141 = vpop.f32.mrf.mxu0
  %v2142 = vadd.f32 %v2053, %v2141
  %v2143 = vpop.f32.mrf.mxu0
  %v2144 = vadd.f32 %v2055, %v2143
  %2145 = vmatmul.bf16.gmra.mxu0 %v1581
  %v2146 = vpop.f32.mrf.mxu0
  %v2147 = vadd.f32 %v2058, %v2146
  %v2148 = vpop.f32.mrf.mxu0
  %v2149 = vadd.f32 %v2060, %v2148
  %2150 = vmatmul.bf16.gmra.mxu0 %v1585
  %v2151 = vpop.f32.mrf.mxu0
  %v2152 = vadd.f32 %v2063, %v2151
  %v2153 = vpop.f32.mrf.mxu0
  %v2154 = vadd.f32 %v2065, %v2153
  %2155 = vdwg.mxu0
  %2156 = vmatpush.bf16.msra.mxu0 %v1896
  %2157 = vmatpush.bf16.msra.mxu0 %v1894
  %2158 = vmatpush.bf16.msra.mxu0 %v1892
  %2159 = vmatpush.bf16.msra.mxu0 %v1890
  %2160 = vmatpush.bf16.msra.mxu0 %v1888
  %2161 = vmatpush.bf16.msra.mxu0 %v1886
  %2162 = vmatpush.bf16.msra.mxu0 %v1884
  %2163 = vmatpush.bf16.msra.mxu0 %v1882
  %2164 = vmatmul.bf16.gmra.mxu0 %v1526
  %v2165 = vpop.f32.mrf.mxu0
  %v2166 = vadd.f32 %v2077, %v2165
  %v2167 = vpop.f32.mrf.mxu0
  %v2168 = vadd.f32 %v2079, %v2167
  %2169 = vmatmul.bf16.gmra.mxu0 %v1530
  %v2170 = vpop.f32.mrf.mxu0
  %v2171 = vadd.f32 %v2082, %v2170
  %v2172 = vpop.f32.mrf.mxu0
  %v2173 = vadd.f32 %v2084, %v2172
  %2174 = vmatmul.bf16.gmra.mxu0 %v1534
  %v2175 = vpop.f32.mrf.mxu0
  %v2176 = vadd.f32 %v2087, %v2175
  %v2177 = vpop.f32.mrf.mxu0
  %v2178 = vadd.f32 %v2089, %v2177
  %2179 = vmatmul.bf16.gmra.mxu0 %v1538
  %v2180 = vpop.f32.mrf.mxu0
  %v2181 = vadd.f32 %v2092, %v2180
  %v2182 = vpop.f32.mrf.mxu0
  %v2183 = vadd.f32 %v2094, %v2182
  %2184 = vmatmul.bf16.gmra.mxu0 %v1542
  %v2185 = vpop.f32.mrf.mxu0
  %v2186 = vadd.f32 %v2097, %v2185
  %v2187 = vpop.f32.mrf.mxu0
  %v2188 = vadd.f32 %v2099, %v2187
  %2189 = vmatmul.bf16.gmra.mxu0 %v1546
  %v2190 = vpop.f32.mrf.mxu0
  %v2191 = vadd.f32 %v2102, %v2190
  %v2192 = vpop.f32.mrf.mxu0
  %v2193 = vadd.f32 %v2104, %v2192
  %2194 = vmatmul.bf16.gmra.mxu0 %v1550
  %v2195 = vpop.f32.mrf.mxu0
  %v2196 = vadd.f32 %v2107, %v2195
  %v2197 = vpop.f32.mrf.mxu0
  %v2198 = vadd.f32 %v2109, %v2197
  %2199 = vmatmul.bf16.gmra.mxu0 %v1554
  %v2200 = vpop.f32.mrf.mxu0
  %v2201 = vadd.f32 %v2112, %v2200
  %v2202 = vpop.f32.mrf.mxu0
  %v2203 = vadd.f32 %v2114, %v2202
  %2204 = vmatmul.bf16.gmra.mxu0 %v1558
  %v2205 = vpop.f32.mrf.mxu0
  %v2206 = vadd.f32 %v2117, %v2205
  %v2207 = vpop.f32.mrf.mxu0
  %v2208 = vadd.f32 %v2119, %v2207
  %2209 = vmatmul.bf16.gmra.mxu0 %v1562
  %v2210 = vpop.f32.mrf.mxu0
  %v2211 = vadd.f32 %v2122, %v2210
  %v2212 = vpop.f32.mrf.mxu0
  %v2213 = vadd.f32 %v2124, %v2212
  %2214 = vmatmul.bf16.gmra.mxu0 %v1566
  %v2215 = vpop.f32.mrf.mxu0
  %v2216 = vadd.f32 %v2127, %v2215
  %v2217 = vpop.f32.mrf.mxu0
  %v2218 = vadd.f32 %v2129, %v2217
  %2219 = vmatmul.bf16.gmra.mxu0 %v1570
  %v2220 = vpop.f32.mrf.mxu0
  %v2221 = vadd.f32 %v2132, %v2220
  %v2222 = vpop.f32.mrf.mxu0
  %v2223 = vadd.f32 %v2134, %v2222
  %2224 = vmatmul.bf16.gmra.mxu0 %v1574
  %v2225 = vpop.f32.mrf.mxu0
  %v2226 = vadd.f32 %v2137, %v2225
  %v2227 = vpop.f32.mrf.mxu0
  %v2228 = vadd.f32 %v2139, %v2227
  %2229 = vmatmul.bf16.gmra.mxu0 %v1578
  %v2230 = vpop.f32.mrf.mxu0
  %v2231 = vadd.f32 %v2142, %v2230
  %v2232 = vpop.f32.mrf.mxu0
  %v2233 = vadd.f32 %v2144, %v2232
  %2234 = vmatmul.bf16.gmra.mxu0 %v1582
  %v2235 = vpop.f32.mrf.mxu0
  %v2236 = vadd.f32 %v2147, %v2235
  %v2237 = vpop.f32.mrf.mxu0
  %v2238 = vadd.f32 %v2149, %v2237
  %2239 = vmatmul.bf16.gmra.mxu0 %v1586
  %v2240 = vpop.f32.mrf.mxu0
  %v2241 = vadd.f32 %v2152, %v2240
  %v2242 = vpop.f32.mrf.mxu0
  %v2243 = vadd.f32 %v2154, %v2242
  %2244 = vdwg.mxu0
  %2245 = vmatpush.bf16.msra.mxu0 %v1912
  %2246 = vmatpush.bf16.msra.mxu0 %v1910
  %2247 = vmatpush.bf16.msra.mxu0 %v1908
  %2248 = vmatpush.bf16.msra.mxu0 %v1906
  %2249 = vmatpush.bf16.msra.mxu0 %v1904
  %2250 = vmatpush.bf16.msra.mxu0 %v1902
  %2251 = vmatpush.bf16.msra.mxu0 %v1900
  %2252 = vmatpush.bf16.msra.mxu0 %v1898
  %2253 = vmatmul.bf16.gmra.mxu0 %v1527
  %v2254 = vpop.f32.mrf.mxu0
  %v2255 = vadd.f32 %v2166, %v2254
  %v2256 = vpop.f32.mrf.mxu0
  %v2257 = vadd.f32 %v2168, %v2256
  %2258 = vmatmul.bf16.gmra.mxu0 %v1531
  %v2259 = vpop.f32.mrf.mxu0
  %v2260 = vadd.f32 %v2171, %v2259
  %v2261 = vpop.f32.mrf.mxu0
  %v2262 = vadd.f32 %v2173, %v2261
  %2263 = vmatmul.bf16.gmra.mxu0 %v1535
  %v2264 = vpop.f32.mrf.mxu0
  %v2265 = vadd.f32 %v2176, %v2264
  %v2266 = vpop.f32.mrf.mxu0
  %v2267 = vadd.f32 %v2178, %v2266
  %2268 = vmatmul.bf16.gmra.mxu0 %v1539
  %v2269 = vpop.f32.mrf.mxu0
  %v2270 = vadd.f32 %v2181, %v2269
  %v2271 = vpop.f32.mrf.mxu0
  %v2272 = vadd.f32 %v2183, %v2271
  %2273 = vmatmul.bf16.gmra.mxu0 %v1543
  %v2274 = vpop.f32.mrf.mxu0
  %v2275 = vadd.f32 %v2186, %v2274
  %v2276 = vpop.f32.mrf.mxu0
  %v2277 = vadd.f32 %v2188, %v2276
  %2278 = vmatmul.bf16.gmra.mxu0 %v1547
  %v2279 = vpop.f32.mrf.mxu0
  %v2280 = vadd.f32 %v2191, %v2279
  %v2281 = vpop.f32.mrf.mxu0
  %v2282 = vadd.f32 %v2193, %v2281
  %2283 = vmatmul.bf16.gmra.mxu0 %v1551
  %v2284 = vpop.f32.mrf.mxu0
  %v2285 = vadd.f32 %v2196, %v2284
  %v2286 = vpop.f32.mrf.mxu0
  %v2287 = vadd.f32 %v2198, %v2286
  %2288 = vmatmul.bf16.gmra.mxu0 %v1555
  %v2289 = vpop.f32.mrf.mxu0
  %v2290 = vadd.f32 %v2201, %v2289
  %v2291 = vpop.f32.mrf.mxu0
  %v2292 = vadd.f32 %v2203, %v2291
  %2293 = vmatmul.bf16.gmra.mxu0 %v1559
  %v2294 = vpop.f32.mrf.mxu0
  %v2295 = vadd.f32 %v2206, %v2294
  %v2296 = vpop.f32.mrf.mxu0
  %v2297 = vadd.f32 %v2208, %v2296
  %2298 = vmatmul.bf16.gmra.mxu0 %v1563
  %v2299 = vpop.f32.mrf.mxu0
  %v2300 = vadd.f32 %v2211, %v2299
  %v2301 = vpop.f32.mrf.mxu0
  %v2302 = vadd.f32 %v2213, %v2301
  %2303 = vmatmul.bf16.gmra.mxu0 %v1567
  %v2304 = vpop.f32.mrf.mxu0
  %v2305 = vadd.f32 %v2216, %v2304
  %v2306 = vpop.f32.mrf.mxu0
  %v2307 = vadd.f32 %v2218, %v2306
  %2308 = vmatmul.bf16.gmra.mxu0 %v1571
  %v2309 = vpop.f32.mrf.mxu0
  %v2310 = vadd.f32 %v2221, %v2309
  %v2311 = vpop.f32.mrf.mxu0
  %v2312 = vadd.f32 %v2223, %v2311
  %2313 = vmatmul.bf16.gmra.mxu0 %v1575
  %v2314 = vpop.f32.mrf.mxu0
  %v2315 = vadd.f32 %v2226, %v2314
  %v2316 = vpop.f32.mrf.mxu0
  %v2317 = vadd.f32 %v2228, %v2316
  %2318 = vmatmul.bf16.gmra.mxu0 %v1579
  %v2319 = vpop.f32.mrf.mxu0
  %v2320 = vadd.f32 %v2231, %v2319
  %v2321 = vpop.f32.mrf.mxu0
  %v2322 = vadd.f32 %v2233, %v2321
  %2323 = vmatmul.bf16.gmra.mxu0 %v1583
  %v2324 = vpop.f32.mrf.mxu0
  %v2325 = vadd.f32 %v2236, %v2324
  %v2326 = vpop.f32.mrf.mxu0
  %v2327 = vadd.f32 %v2238, %v2326
  %2328 = vmatmul.bf16.gmra.mxu0 %v1587
  %v2329 = vpop.f32.mrf.mxu0
  %v2330 = vadd.f32 %v2241, %v2329
  %v2331 = vpop.f32.mrf.mxu0
  %v2332 = vadd.f32 %v2243, %v2331
  %2333 = vdwg.mxu0
  %2334 = vmatpush.bf16.msra.mxu0 %v1865
  %2335 = vmatpush.bf16.msra.mxu0 %v1863
  %2336 = vmatpush.bf16.msra.mxu0 %v1861
  %2337 = vmatpush.bf16.msra.mxu0 %v1859
  %2338 = vmatpush.bf16.msra.mxu0 %v1857
  %2339 = vmatpush.bf16.msra.mxu0 %v1855
  %2340 = vmatpush.bf16.msra.mxu0 %v1853
  %2341 = vmatpush.bf16.msra.mxu0 %v1851
  %2342 = vmatmul.bf16.gmra.mxu0 %v1524
  %v2343 = vpop.f32.mrf.mxu0
  %v2344 = vadd.f32 %v1655, %v2343
  %v2345 = vpop.f32.mrf.mxu0
  %v2346 = vadd.f32 %v1655, %v2345
  %2347 = vmatmul.bf16.gmra.mxu0 %v1528
  %v2348 = vpop.f32.mrf.mxu0
  %v2349 = vadd.f32 %v1655, %v2348
  %v2350 = vpop.f32.mrf.mxu0
  %v2351 = vadd.f32 %v1655, %v2350
  %2352 = vmatmul.bf16.gmra.mxu0 %v1532
  %v2353 = vpop.f32.mrf.mxu0
  %v2354 = vadd.f32 %v1655, %v2353
  %v2355 = vpop.f32.mrf.mxu0
  %v2356 = vadd.f32 %v1655, %v2355
  %2357 = vmatmul.bf16.gmra.mxu0 %v1536
  %v2358 = vpop.f32.mrf.mxu0
  %v2359 = vadd.f32 %v1655, %v2358
  %v2360 = vpop.f32.mrf.mxu0
  %v2361 = vadd.f32 %v1655, %v2360
  %2362 = vmatmul.bf16.gmra.mxu0 %v1540
  %v2363 = vpop.f32.mrf.mxu0
  %v2364 = vadd.f32 %v1655, %v2363
  %v2365 = vpop.f32.mrf.mxu0
  %v2366 = vadd.f32 %v1655, %v2365
  %2367 = vmatmul.bf16.gmra.mxu0 %v1544
  %v2368 = vpop.f32.mrf.mxu0
  %v2369 = vadd.f32 %v1655, %v2368
  %v2370 = vpop.f32.mrf.mxu0
  %v2371 = vadd.f32 %v1655, %v2370
  %2372 = vmatmul.bf16.gmra.mxu0 %v1548
  %v2373 = vpop.f32.mrf.mxu0
  %v2374 = vadd.f32 %v1655, %v2373
  %v2375 = vpop.f32.mrf.mxu0
  %v2376 = vadd.f32 %v1655, %v2375
  %2377 = vmatmul.bf16.gmra.mxu0 %v1552
  %v2378 = vpop.f32.mrf.mxu0
  %v2379 = vadd.f32 %v1655, %v2378
  %v2380 = vpop.f32.mrf.mxu0
  %v2381 = vadd.f32 %v1655, %v2380
  %2382 = vmatmul.bf16.gmra.mxu0 %v1556
  %v2383 = vpop.f32.mrf.mxu0
  %v2384 = vadd.f32 %v1655, %v2383
  %v2385 = vpop.f32.mrf.mxu0
  %v2386 = vadd.f32 %v1655, %v2385
  %2387 = vmatmul.bf16.gmra.mxu0 %v1560
  %v2388 = vpop.f32.mrf.mxu0
  %v2389 = vadd.f32 %v1655, %v2388
  %v2390 = vpop.f32.mrf.mxu0
  %v2391 = vadd.f32 %v1655, %v2390
  %2392 = vmatmul.bf16.gmra.mxu0 %v1564
  %v2393 = vpop.f32.mrf.mxu0
  %v2394 = vadd.f32 %v1655, %v2393
  %v2395 = vpop.f32.mrf.mxu0
  %v2396 = vadd.f32 %v1655, %v2395
  %2397 = vmatmul.bf16.gmra.mxu0 %v1568
  %v2398 = vpop.f32.mrf.mxu0
  %v2399 = vadd.f32 %v1655, %v2398
  %v2400 = vpop.f32.mrf.mxu0
  %v2401 = vadd.f32 %v1655, %v2400
  %2402 = vmatmul.bf16.gmra.mxu0 %v1572
  %v2403 = vpop.f32.mrf.mxu0
  %v2404 = vadd.f32 %v1655, %v2403
  %v2405 = vpop.f32.mrf.mxu0
  %v2406 = vadd.f32 %v1655, %v2405
  %2407 = vmatmul.bf16.gmra.mxu0 %v1576
  %v2408 = vpop.f32.mrf.mxu0
  %v2409 = vadd.f32 %v1655, %v2408
  %v2410 = vpop.f32.mrf.mxu0
  %v2411 = vadd.f32 %v1655, %v2410
  %2412 = vmatmul.bf16.gmra.mxu0 %v1580
  %v2413 = vpop.f32.mrf.mxu0
  %v2414 = vadd.f32 %v1655, %v2413
  %v2415 = vpop.f32.mrf.mxu0
  %v2416 = vadd.f32 %v1655, %v2415
  %2417 = vmatmul.bf16.gmra.mxu0 %v1584
  %v2418 = vpop.f32.mrf.mxu0
  %v2419 = vadd.f32 %v1655, %v2418
  %v2420 = vpop.f32.mrf.mxu0
  %v2421 = vadd.f32 %v1655, %v2420
  %2422 = vdwg.mxu0
  %2423 = vmatpush.bf16.msra.mxu0 %v1881
  %2424 = vmatpush.bf16.msra.mxu0 %v1879
  %2425 = vmatpush.bf16.msra.mxu0 %v1877
  %2426 = vmatpush.bf16.msra.mxu0 %v1875
  %2427 = vmatpush.bf16.msra.mxu0 %v1873
  %2428 = vmatpush.bf16.msra.mxu0 %v1871
  %2429 = vmatpush.bf16.msra.mxu0 %v1869
  %2430 = vmatpush.bf16.msra.mxu0 %v1867
  %2431 = vmatmul.bf16.gmra.mxu0 %v1525
  %v2432 = vpop.f32.mrf.mxu0
  %v2433 = vadd.f32 %v2344, %v2432
  %v2434 = vpop.f32.mrf.mxu0
  %v2435 = vadd.f32 %v2346, %v2434
  %2436 = vmatmul.bf16.gmra.mxu0 %v1529
  %v2437 = vpop.f32.mrf.mxu0
  %v2438 = vadd.f32 %v2349, %v2437
  %v2439 = vpop.f32.mrf.mxu0
  %v2440 = vadd.f32 %v2351, %v2439
  %2441 = vmatmul.bf16.gmra.mxu0 %v1533
  %v2442 = vpop.f32.mrf.mxu0
  %v2443 = vadd.f32 %v2354, %v2442
  %v2444 = vpop.f32.mrf.mxu0
  %v2445 = vadd.f32 %v2356, %v2444
  %2446 = vmatmul.bf16.gmra.mxu0 %v1537
  %v2447 = vpop.f32.mrf.mxu0
  %v2448 = vadd.f32 %v2359, %v2447
  %v2449 = vpop.f32.mrf.mxu0
  %v2450 = vadd.f32 %v2361, %v2449
  %2451 = vmatmul.bf16.gmra.mxu0 %v1541
  %v2452 = vpop.f32.mrf.mxu0
  %v2453 = vadd.f32 %v2364, %v2452
  %v2454 = vpop.f32.mrf.mxu0
  %v2455 = vadd.f32 %v2366, %v2454
  %2456 = vmatmul.bf16.gmra.mxu0 %v1545
  %v2457 = vpop.f32.mrf.mxu0
  %v2458 = vadd.f32 %v2369, %v2457
  %v2459 = vpop.f32.mrf.mxu0
  %v2460 = vadd.f32 %v2371, %v2459
  %2461 = vmatmul.bf16.gmra.mxu0 %v1549
  %v2462 = vpop.f32.mrf.mxu0
  %v2463 = vadd.f32 %v2374, %v2462
  %v2464 = vpop.f32.mrf.mxu0
  %v2465 = vadd.f32 %v2376, %v2464
  %2466 = vmatmul.bf16.gmra.mxu0 %v1553
  %v2467 = vpop.f32.mrf.mxu0
  %v2468 = vadd.f32 %v2379, %v2467
  %v2469 = vpop.f32.mrf.mxu0
  %v2470 = vadd.f32 %v2381, %v2469
  %2471 = vmatmul.bf16.gmra.mxu0 %v1557
  %v2472 = vpop.f32.mrf.mxu0
  %v2473 = vadd.f32 %v2384, %v2472
  %v2474 = vpop.f32.mrf.mxu0
  %v2475 = vadd.f32 %v2386, %v2474
  %2476 = vmatmul.bf16.gmra.mxu0 %v1561
  %v2477 = vpop.f32.mrf.mxu0
  %v2478 = vadd.f32 %v2389, %v2477
  %v2479 = vpop.f32.mrf.mxu0
  %v2480 = vadd.f32 %v2391, %v2479
  %2481 = vmatmul.bf16.gmra.mxu0 %v1565
  %v2482 = vpop.f32.mrf.mxu0
  %v2483 = vadd.f32 %v2394, %v2482
  %v2484 = vpop.f32.mrf.mxu0
  %v2485 = vadd.f32 %v2396, %v2484
  %2486 = vmatmul.bf16.gmra.mxu0 %v1569
  %v2487 = vpop.f32.mrf.mxu0
  %v2488 = vadd.f32 %v2399, %v2487
  %v2489 = vpop.f32.mrf.mxu0
  %v2490 = vadd.f32 %v2401, %v2489
  %2491 = vmatmul.bf16.gmra.mxu0 %v1573
  %v2492 = vpop.f32.mrf.mxu0
  %v2493 = vadd.f32 %v2404, %v2492
  %v2494 = vpop.f32.mrf.mxu0
  %v2495 = vadd.f32 %v2406, %v2494
  %2496 = vmatmul.bf16.gmra.mxu0 %v1577
  %v2497 = vpop.f32.mrf.mxu0
  %v2498 = vadd.f32 %v2409, %v2497
  %v2499 = vpop.f32.mrf.mxu0
  %v2500 = vadd.f32 %v2411, %v2499
  %2501 = vmatmul.bf16.gmra.mxu0 %v1581
  %v2502 = vpop.f32.mrf.mxu0
  %v2503 = vadd.f32 %v2414, %v2502
  %v2504 = vpop.f32.mrf.mxu0
  %v2505 = vadd.f32 %v2416, %v2504
  %2506 = vmatmul.bf16.gmra.mxu0 %v1585
  %v2507 = vpop.f32.mrf.mxu0
  %v2508 = vadd.f32 %v2419, %v2507
  %v2509 = vpop.f32.mrf.mxu0
  %v2510 = vadd.f32 %v2421, %v2509
  %2511 = vdwg.mxu0
  %2512 = vmatpush.bf16.msra.mxu0 %v1897
  %2513 = vmatpush.bf16.msra.mxu0 %v1895
  %2514 = vmatpush.bf16.msra.mxu0 %v1893
  %2515 = vmatpush.bf16.msra.mxu0 %v1891
  %2516 = vmatpush.bf16.msra.mxu0 %v1889
  %2517 = vmatpush.bf16.msra.mxu0 %v1887
  %2518 = vmatpush.bf16.msra.mxu0 %v1885
  %2519 = vmatpush.bf16.msra.mxu0 %v1883
  %2520 = vmatmul.bf16.gmra.mxu0 %v1526
  %v2521 = vpop.f32.mrf.mxu0
  %v2522 = vadd.f32 %v2433, %v2521
  %v2523 = vpop.f32.mrf.mxu0
  %v2524 = vadd.f32 %v2435, %v2523
  %2525 = vmatmul.bf16.gmra.mxu0 %v1530
  %v2526 = vpop.f32.mrf.mxu0
  %v2527 = vadd.f32 %v2438, %v2526
  %v2528 = vpop.f32.mrf.mxu0
  %v2529 = vadd.f32 %v2440, %v2528
  %2530 = vmatmul.bf16.gmra.mxu0 %v1534
  %v2531 = vpop.f32.mrf.mxu0
  %v2532 = vadd.f32 %v2443, %v2531
  %v2533 = vpop.f32.mrf.mxu0
  %v2534 = vadd.f32 %v2445, %v2533
  %2535 = vmatmul.bf16.gmra.mxu0 %v1538
  %v2536 = vpop.f32.mrf.mxu0
  %v2537 = vadd.f32 %v2448, %v2536
  %v2538 = vpop.f32.mrf.mxu0
  %v2539 = vadd.f32 %v2450, %v2538
  %2540 = vmatmul.bf16.gmra.mxu0 %v1542
  %v2541 = vpop.f32.mrf.mxu0
  %v2542 = vadd.f32 %v2453, %v2541
  %v2543 = vpop.f32.mrf.mxu0
  %v2544 = vadd.f32 %v2455, %v2543
  %2545 = vmatmul.bf16.gmra.mxu0 %v1546
  %v2546 = vpop.f32.mrf.mxu0
  %v2547 = vadd.f32 %v2458, %v2546
  %v2548 = vpop.f32.mrf.mxu0
  %v2549 = vadd.f32 %v2460, %v2548
  %2550 = vmatmul.bf16.gmra.mxu0 %v1550
  %v2551 = vpop.f32.mrf.mxu0
  %v2552 = vadd.f32 %v2463, %v2551
  %v2553 = vpop.f32.mrf.mxu0
  %v2554 = vadd.f32 %v2465, %v2553
  %2555 = vmatmul.bf16.gmra.mxu0 %v1554
  %v2556 = vpop.f32.mrf.mxu0
  %v2557 = vadd.f32 %v2468, %v2556
  %v2558 = vpop.f32.mrf.mxu0
  %v2559 = vadd.f32 %v2470, %v2558
  %2560 = vmatmul.bf16.gmra.mxu0 %v1558
  %v2561 = vpop.f32.mrf.mxu0
  %v2562 = vadd.f32 %v2473, %v2561
  %v2563 = vpop.f32.mrf.mxu0
  %v2564 = vadd.f32 %v2475, %v2563
  %2565 = vmatmul.bf16.gmra.mxu0 %v1562
  %v2566 = vpop.f32.mrf.mxu0
  %v2567 = vadd.f32 %v2478, %v2566
  %v2568 = vpop.f32.mrf.mxu0
  %v2569 = vadd.f32 %v2480, %v2568
  %2570 = vmatmul.bf16.gmra.mxu0 %v1566
  %v2571 = vpop.f32.mrf.mxu0
  %v2572 = vadd.f32 %v2483, %v2571
  %v2573 = vpop.f32.mrf.mxu0
  %v2574 = vadd.f32 %v2485, %v2573
  %2575 = vmatmul.bf16.gmra.mxu0 %v1570
  %v2576 = vpop.f32.mrf.mxu0
  %v2577 = vadd.f32 %v2488, %v2576
  %v2578 = vpop.f32.mrf.mxu0
  %v2579 = vadd.f32 %v2490, %v2578
  %2580 = vmatmul.bf16.gmra.mxu0 %v1574
  %v2581 = vpop.f32.mrf.mxu0
  %v2582 = vadd.f32 %v2493, %v2581
  %v2583 = vpop.f32.mrf.mxu0
  %v2584 = vadd.f32 %v2495, %v2583
  %2585 = vmatmul.bf16.gmra.mxu0 %v1578
  %v2586 = vpop.f32.mrf.mxu0
  %v2587 = vadd.f32 %v2498, %v2586
  %v2588 = vpop.f32.mrf.mxu0
  %v2589 = vadd.f32 %v2500, %v2588
  %2590 = vmatmul.bf16.gmra.mxu0 %v1582
  %v2591 = vpop.f32.mrf.mxu0
  %v2592 = vadd.f32 %v2503, %v2591
  %v2593 = vpop.f32.mrf.mxu0
  %v2594 = vadd.f32 %v2505, %v2593
  %2595 = vmatmul.bf16.gmra.mxu0 %v1586
  %v2596 = vpop.f32.mrf.mxu0
  %v2597 = vadd.f32 %v2508, %v2596
  %v2598 = vpop.f32.mrf.mxu0
  %v2599 = vadd.f32 %v2510, %v2598
  %2600 = vdwg.mxu0
  %2601 = vmatpush.bf16.msra.mxu0 %v1913
  %2602 = vmatpush.bf16.msra.mxu0 %v1911
  %2603 = vmatpush.bf16.msra.mxu0 %v1909
  %2604 = vmatpush.bf16.msra.mxu0 %v1907
  %2605 = vmatpush.bf16.msra.mxu0 %v1905
  %2606 = vmatpush.bf16.msra.mxu0 %v1903
  %2607 = vmatpush.bf16.msra.mxu0 %v1901
  %2608 = vmatpush.bf16.msra.mxu0 %v1899
  %2609 = vmatmul.bf16.gmra.mxu0 %v1527
  %v2610 = vpop.f32.mrf.mxu0
  %v2611 = vadd.f32 %v2522, %v2610
  %v2612 = vpop.f32.mrf.mxu0
  %v2613 = vadd.f32 %v2524, %v2612
  %2614 = vmatmul.bf16.gmra.mxu0 %v1531
  %v2615 = vpop.f32.mrf.mxu0
  %v2616 = vadd.f32 %v2527, %v2615
  %v2617 = vpop.f32.mrf.mxu0
  %v2618 = vadd.f32 %v2529, %v2617
  %2619 = vmatmul.bf16.gmra.mxu0 %v1535
  %v2620 = vpop.f32.mrf.mxu0
  %v2621 = vadd.f32 %v2532, %v2620
  %v2622 = vpop.f32.mrf.mxu0
  %v2623 = vadd.f32 %v2534, %v2622
  %2624 = vmatmul.bf16.gmra.mxu0 %v1539
  %v2625 = vpop.f32.mrf.mxu0
  %v2626 = vadd.f32 %v2537, %v2625
  %v2627 = vpop.f32.mrf.mxu0
  %v2628 = vadd.f32 %v2539, %v2627
  %2629 = vmatmul.bf16.gmra.mxu0 %v1543
  %v2630 = vpop.f32.mrf.mxu0
  %v2631 = vadd.f32 %v2542, %v2630
  %v2632 = vpop.f32.mrf.mxu0
  %v2633 = vadd.f32 %v2544, %v2632
  %2634 = vmatmul.bf16.gmra.mxu0 %v1547
  %v2635 = vpop.f32.mrf.mxu0
  %v2636 = vadd.f32 %v2547, %v2635
  %v2637 = vpop.f32.mrf.mxu0
  %v2638 = vadd.f32 %v2549, %v2637
  %2639 = vmatmul.bf16.gmra.mxu0 %v1551
  %v2640 = vpop.f32.mrf.mxu0
  %v2641 = vadd.f32 %v2552, %v2640
  %v2642 = vpop.f32.mrf.mxu0
  %v2643 = vadd.f32 %v2554, %v2642
  %2644 = vmatmul.bf16.gmra.mxu0 %v1555
  %v2645 = vpop.f32.mrf.mxu0
  %v2646 = vadd.f32 %v2557, %v2645
  %v2647 = vpop.f32.mrf.mxu0
  %v2648 = vadd.f32 %v2559, %v2647
  %2649 = vmatmul.bf16.gmra.mxu0 %v1559
  %v2650 = vpop.f32.mrf.mxu0
  %v2651 = vadd.f32 %v2562, %v2650
  %v2652 = vpop.f32.mrf.mxu0
  %v2653 = vadd.f32 %v2564, %v2652
  %2654 = vmatmul.bf16.gmra.mxu0 %v1563
  %v2655 = vpop.f32.mrf.mxu0
  %v2656 = vadd.f32 %v2567, %v2655
  %v2657 = vpop.f32.mrf.mxu0
  %v2658 = vadd.f32 %v2569, %v2657
  %2659 = vmatmul.bf16.gmra.mxu0 %v1567
  %v2660 = vpop.f32.mrf.mxu0
  %v2661 = vadd.f32 %v2572, %v2660
  %v2662 = vpop.f32.mrf.mxu0
  %v2663 = vadd.f32 %v2574, %v2662
  %2664 = vmatmul.bf16.gmra.mxu0 %v1571
  %v2665 = vpop.f32.mrf.mxu0
  %v2666 = vadd.f32 %v2577, %v2665
  %v2667 = vpop.f32.mrf.mxu0
  %v2668 = vadd.f32 %v2579, %v2667
  %2669 = vmatmul.bf16.gmra.mxu0 %v1575
  %v2670 = vpop.f32.mrf.mxu0
  %v2671 = vadd.f32 %v2582, %v2670
  %v2672 = vpop.f32.mrf.mxu0
  %v2673 = vadd.f32 %v2584, %v2672
  %2674 = vmatmul.bf16.gmra.mxu0 %v1579
  %v2675 = vpop.f32.mrf.mxu0
  %v2676 = vadd.f32 %v2587, %v2675
  %v2677 = vpop.f32.mrf.mxu0
  %v2678 = vadd.f32 %v2589, %v2677
  %2679 = vmatmul.bf16.gmra.mxu0 %v1583
  %v2680 = vpop.f32.mrf.mxu0
  %v2681 = vadd.f32 %v2592, %v2680
  %v2682 = vpop.f32.mrf.mxu0
  %v2683 = vadd.f32 %v2594, %v2682
  %2684 = vmatmul.bf16.gmra.mxu0 %v1587
  %v2685 = vpop.f32.mrf.mxu0
  %v2686 = vadd.f32 %v2597, %v2685
  %v2687 = vpop.f32.mrf.mxu0
  %v2688 = vadd.f32 %v2599, %v2687
  %2689 = vdwg.mxu0
  %v2690 = vmax.f32 %v2255, 0.0
  %v2691 = vmax.f32 %v2611, 0.0
  %v2692 = vmax.f32 %v2257, 0.0
  %v2693 = vmax.f32 %v2613, 0.0
  %v2694 = vmax.f32 %v2260, 0.0
  %v2695 = vmax.f32 %v2616, 0.0
  %v2696 = vmax.f32 %v2262, 0.0
  %v2697 = vmax.f32 %v2618, 0.0
  %v2698 = vmax.f32 %v2265, 0.0
  %v2699 = vmax.f32 %v2621, 0.0
  %v2700 = vmax.f32 %v2267, 0.0
  %v2701 = vmax.f32 %v2623, 0.0
  %v2702 = vmax.f32 %v2270, 0.0
  %v2703 = vmax.f32 %v2626, 0.0
  %v2704 = vmax.f32 %v2272, 0.0
  %v2705 = vmax.f32 %v2628, 0.0
  %v2706 = vmax.f32 %v2275, 0.0
  %v2707 = vmax.f32 %v2631, 0.0
  %v2708 = vmax.f32 %v2277, 0.0
  %v2709 = vmax.f32 %v2633, 0.0
  %v2710 = vmax.f32 %v2280, 0.0
  %v2711 = vmax.f32 %v2636, 0.0
  %v2712 = vmax.f32 %v2282, 0.0
  %v2713 = vmax.f32 %v2638, 0.0
  %v2714 = vmax.f32 %v2285, 0.0
  %v2715 = vmax.f32 %v2641, 0.0
  %v2716 = vmax.f32 %v2287, 0.0
  %v2717 = vmax.f32 %v2643, 0.0
  %v2718 = vmax.f32 %v2290, 0.0
  %v2719 = vmax.f32 %v2646, 0.0
  %v2720 = vmax.f32 %v2292, 0.0
  %v2721 = vmax.f32 %v2648, 0.0
  %v2722 = vmax.f32 %v2295, 0.0
  %v2723 = vmax.f32 %v2651, 0.0
  %v2724 = vmax.f32 %v2297, 0.0
  %v2725 = vmax.f32 %v2653, 0.0
  %v2726 = vmax.f32 %v2300, 0.0
  %v2727 = vmax.f32 %v2656, 0.0
  %v2728 = vmax.f32 %v2302, 0.0
  %v2729 = vmax.f32 %v2658, 0.0
  %v2730 = vmax.f32 %v2305, 0.0
  %v2731 = vmax.f32 %v2661, 0.0
  %v2732 = vmax.f32 %v2307, 0.0
  %v2733 = vmax.f32 %v2663, 0.0
  %v2734 = vmax.f32 %v2310, 0.0
  %v2735 = vmax.f32 %v2666, 0.0
  %v2736 = vmax.f32 %v2312, 0.0
  %v2737 = vmax.f32 %v2668, 0.0
  %v2738 = vmax.f32 %v2315, 0.0
  %v2739 = vmax.f32 %v2671, 0.0
  %v2740 = vmax.f32 %v2317, 0.0
  %v2741 = vmax.f32 %v2673, 0.0
  %v2742 = vmax.f32 %v2320, 0.0
  %v2743 = vmax.f32 %v2676, 0.0
  %v2744 = vmax.f32 %v2322, 0.0
  %v2745 = vmax.f32 %v2678, 0.0
  %v2746 = vmax.f32 %v2325, 0.0
  %v2747 = vmax.f32 %v2681, 0.0
  %v2748 = vmax.f32 %v2327, 0.0
  %v2749 = vmax.f32 %v2683, 0.0
  %v2750 = vmax.f32 %v2330, 0.0
  %v2751 = vmax.f32 %v2686, 0.0
  %v2752 = vmax.f32 %v2332, 0.0
  %v2753 = vmax.f32 %v2688, 0.0
  %v2754 = vpack.c.bf16 %v2692, %v2690
  %v2755 = vpack.c.bf16 %v2693, %v2691
  %v2756 = vpack.c.bf16 %v2696, %v2694
  %v2757 = vpack.c.bf16 %v2697, %v2695
  %v2758 = vpack.c.bf16 %v2700, %v2698
  %v2759 = vpack.c.bf16 %v2701, %v2699
  %v2760 = vpack.c.bf16 %v2704, %v2702
  %v2761 = vpack.c.bf16 %v2705, %v2703
  %v2762 = vpack.c.bf16 %v2708, %v2706
  %v2763 = vpack.c.bf16 %v2709, %v2707
  %v2764 = vpack.c.bf16 %v2712, %v2710
  %v2765 = vpack.c.bf16 %v2713, %v2711
  %v2766 = vpack.c.bf16 %v2716, %v2714
  %v2767 = vpack.c.bf16 %v2717, %v2715
  %v2768 = vpack.c.bf16 %v2720, %v2718
  %v2769 = vpack.c.bf16 %v2721, %v2719
  %v2770 = vpack.c.bf16 %v2724, %v2722
  %v2771 = vpack.c.bf16 %v2725, %v2723
  %v2772 = vpack.c.bf16 %v2728, %v2726
  %v2773 = vpack.c.bf16 %v2729, %v2727
  %v2774 = vpack.c.bf16 %v2732, %v2730
  %v2775 = vpack.c.bf16 %v2733, %v2731
  %v2776 = vpack.c.bf16 %v2736, %v2734
  %v2777 = vpack.c.bf16 %v2737, %v2735
  %v2778 = vpack.c.bf16 %v2740, %v2738
  %v2779 = vpack.c.bf16 %v2741, %v2739
  %v2780 = vpack.c.bf16 %v2744, %v2742
  %v2781 = vpack.c.bf16 %v2745, %v2743
  %v2782 = vpack.c.bf16 %v2748, %v2746
  %v2783 = vpack.c.bf16 %v2749, %v2747
  %v2784 = vpack.c.bf16 %v2752, %v2750
  %v2785 = vpack.c.bf16 %v2753, %v2751
  %v2786 = vld [vmem:[%s7] sm:$0xf]
  %v2787 = vld [vmem:[%s7 + $0x4] sm:$0xf]
  %v2788 = vld [vmem:[%s7 + $0x8] sm:$0xf]
  %v2789 = vld [vmem:[%s7 + $0xc] sm:$0xf]
  %v2790 = vld [vmem:[%s7 + $0x10] sm:$0xf]
  %v2791 = vld [vmem:[%s7 + $0x14] sm:$0xf]
  %v2792 = vld [vmem:[%s7 + $0x18] sm:$0xf]
  %v2793 = vld [vmem:[%s7 + $0x1c] sm:$0xf]
  %v2794 = vld [vmem:[%s7 + $0x20] sm:$0xf]
  %v2795 = vld [vmem:[%s7 + $0x24] sm:$0xf]
  %v2796 = vld [vmem:[%s7 + $0x28] sm:$0xf]
  %v2797 = vld [vmem:[%s7 + $0x2c] sm:$0xf]
  %v2798 = vld [vmem:[%s7 + $0x30] sm:$0xf]
  %v2799 = vld [vmem:[%s7 + $0x34] sm:$0xf]
  %v2800 = vld [vmem:[%s7 + $0x38] sm:$0xf]
  %v2801 = vld [vmem:[%s7 + $0x3c] sm:$0xf]
  %v2802 = vld [vmem:[%s7 + $0x40] sm:$0xf]
  %v2803 = vld [vmem:[%s7 + $0x44] sm:$0xf]
  %v2804 = vld [vmem:[%s7 + $0x48] sm:$0xf]
  %v2805 = vld [vmem:[%s7 + $0x4c] sm:$0xf]
  %v2806 = vld [vmem:[%s7 + $0x50] sm:$0xf]
  %v2807 = vld [vmem:[%s7 + $0x54] sm:$0xf]
  %v2808 = vld [vmem:[%s7 + $0x58] sm:$0xf]
  %v2809 = vld [vmem:[%s7 + $0x5c] sm:$0xf]
  %v2810 = vld [vmem:[%s7 + $0x60] sm:$0xf]
  %v2811 = vld [vmem:[%s7 + $0x64] sm:$0xf]
  %v2812 = vld [vmem:[%s7 + $0x68] sm:$0xf]
  %v2813 = vld [vmem:[%s7 + $0x6c] sm:$0xf]
  %v2814 = vld [vmem:[%s7 + $0x70] sm:$0xf]
  %v2815 = vld [vmem:[%s7 + $0x74] sm:$0xf]
  %v2816 = vld [vmem:[%s7 + $0x78] sm:$0xf]
  %v2817 = vld [vmem:[%s7 + $0x7c] sm:$0xf]
  %v2818 = vld [vmem:[%s8] sm:$0x1]
  %v2820 = vperm.slane %v2818, 0
  %v2854 = vunpack.c.l.b16 %v2786
  %v2855 = vunpack.c.l.b16 %v2787
  %v2856 = vunpack.c.l.b16 %v2788
  %v2857 = vunpack.c.l.b16 %v2789
  %v2858 = vunpack.c.l.b16 %v2790
  %v2859 = vunpack.c.l.b16 %v2791
  %v2860 = vunpack.c.l.b16 %v2792
  %v2861 = vunpack.c.l.b16 %v2793
  %v2862 = vunpack.c.l.b16 %v2794
  %v2863 = vunpack.c.l.b16 %v2795
  %v2864 = vunpack.c.l.b16 %v2796
  %v2865 = vunpack.c.l.b16 %v2797
  %v2866 = vunpack.c.l.b16 %v2798
  %v2867 = vunpack.c.l.b16 %v2799
  %v2868 = vunpack.c.l.b16 %v2800
  %v2869 = vunpack.c.l.b16 %v2801
  %v2870 = vunpack.c.l.b16 %v2802
  %v2871 = vunpack.c.l.b16 %v2803
  %v2872 = vunpack.c.l.b16 %v2804
  %v2873 = vunpack.c.l.b16 %v2805
  %v2874 = vunpack.c.l.b16 %v2806
  %v2875 = vunpack.c.l.b16 %v2807
  %v2876 = vunpack.c.l.b16 %v2808
  %v2877 = vunpack.c.l.b16 %v2809
  %v2878 = vunpack.c.l.b16 %v2810
  %v2879 = vunpack.c.l.b16 %v2811
  %v2880 = vunpack.c.l.b16 %v2812
  %v2881 = vunpack.c.l.b16 %v2813
  %v2882 = vunpack.c.l.b16 %v2814
  %v2883 = vunpack.c.l.b16 %v2815
  %v2884 = vunpack.c.l.b16 %v2816
  %v2885 = vunpack.c.l.b16 %v2817
  %v2886 = vpack.c.b16 %v2855, %v2854
  %v2887 = vpack.c.b16 %v2857, %v2856
  %v2888 = vpack.c.b16 %v2859, %v2858
  %v2889 = vpack.c.b16 %v2861, %v2860
  %v2890 = vpack.c.b16 %v2863, %v2862
  %v2891 = vpack.c.b16 %v2865, %v2864
  %v2892 = vpack.c.b16 %v2867, %v2866
  %v2893 = vpack.c.b16 %v2869, %v2868
  %v2894 = vpack.c.b16 %v2871, %v2870
  %v2895 = vpack.c.b16 %v2873, %v2872
  %v2896 = vpack.c.b16 %v2875, %v2874
  %v2897 = vpack.c.b16 %v2877, %v2876
  %v2898 = vpack.c.b16 %v2879, %v2878
  %v2899 = vpack.c.b16 %v2881, %v2880
  %v2900 = vpack.c.b16 %v2883, %v2882
  %v2901 = vpack.c.b16 %v2885, %v2884
  %2918 = vmatpush.bf16.msra.mxu0 %v2893
  %2919 = vmatpush.bf16.msra.mxu0 %v2892
  %2920 = vmatpush.bf16.msra.mxu0 %v2891
  %2921 = vmatpush.bf16.msra.mxu0 %v2890
  %2922 = vmatpush.bf16.msra.mxu0 %v2889
  %2923 = vmatpush.bf16.msra.mxu0 %v2888
  %2924 = vmatpush.bf16.msra.mxu0 %v2887
  %2925 = vmatpush.bf16.msra.mxu0 %v2886
  %2926 = vmatmul.bf16.gmra.mxu0 %v2754
  %v2927 = vpop.f32.mrf.mxu0
  %v2928 = vadd.f32 %v2820, %v2927
  %v2929 = vpop.f32.mrf.mxu0
  %v2930 = vadd.f32 %v2820, %v2929
  %2931 = vmatmul.bf16.gmra.mxu0 %v2756
  %v2932 = vpop.f32.mrf.mxu0
  %v2933 = vadd.f32 %v2820, %v2932
  %v2934 = vpop.f32.mrf.mxu0
  %v2935 = vadd.f32 %v2820, %v2934
  %2936 = vmatmul.bf16.gmra.mxu0 %v2758
  %v2937 = vpop.f32.mrf.mxu0
  %v2938 = vadd.f32 %v2820, %v2937
  %v2939 = vpop.f32.mrf.mxu0
  %v2940 = vadd.f32 %v2820, %v2939
  %2941 = vmatmul.bf16.gmra.mxu0 %v2760
  %v2942 = vpop.f32.mrf.mxu0
  %v2943 = vadd.f32 %v2820, %v2942
  %v2944 = vpop.f32.mrf.mxu0
  %v2945 = vadd.f32 %v2820, %v2944
  %2946 = vmatmul.bf16.gmra.mxu0 %v2762
  %v2947 = vpop.f32.mrf.mxu0
  %v2948 = vadd.f32 %v2820, %v2947
  %v2949 = vpop.f32.mrf.mxu0
  %v2950 = vadd.f32 %v2820, %v2949
  %2951 = vmatmul.bf16.gmra.mxu0 %v2764
  %v2952 = vpop.f32.mrf.mxu0
  %v2953 = vadd.f32 %v2820, %v2952
  %v2954 = vpop.f32.mrf.mxu0
  %v2955 = vadd.f32 %v2820, %v2954
  %2956 = vmatmul.bf16.gmra.mxu0 %v2766
  %v2957 = vpop.f32.mrf.mxu0
  %v2958 = vadd.f32 %v2820, %v2957
  %v2959 = vpop.f32.mrf.mxu0
  %v2960 = vadd.f32 %v2820, %v2959
  %2961 = vmatmul.bf16.gmra.mxu0 %v2768
  %v2962 = vpop.f32.mrf.mxu0
  %v2963 = vadd.f32 %v2820, %v2962
  %v2964 = vpop.f32.mrf.mxu0
  %v2965 = vadd.f32 %v2820, %v2964
  %2966 = vmatmul.bf16.gmra.mxu0 %v2770
  %v2967 = vpop.f32.mrf.mxu0
  %v2968 = vadd.f32 %v2820, %v2967
  %v2969 = vpop.f32.mrf.mxu0
  %v2970 = vadd.f32 %v2820, %v2969
  %2971 = vmatmul.bf16.gmra.mxu0 %v2772
  %v2972 = vpop.f32.mrf.mxu0
  %v2973 = vadd.f32 %v2820, %v2972
  %v2974 = vpop.f32.mrf.mxu0
  %v2975 = vadd.f32 %v2820, %v2974
  %2976 = vmatmul.bf16.gmra.mxu0 %v2774
  %v2977 = vpop.f32.mrf.mxu0
  %v2978 = vadd.f32 %v2820, %v2977
  %v2979 = vpop.f32.mrf.mxu0
  %v2980 = vadd.f32 %v2820, %v2979
  %2981 = vmatmul.bf16.gmra.mxu0 %v2776
  %v2982 = vpop.f32.mrf.mxu0
  %v2983 = vadd.f32 %v2820, %v2982
  %v2984 = vpop.f32.mrf.mxu0
  %v2985 = vadd.f32 %v2820, %v2984
  %2986 = vmatmul.bf16.gmra.mxu0 %v2778
  %v2987 = vpop.f32.mrf.mxu0
  %v2988 = vadd.f32 %v2820, %v2987
  %v2989 = vpop.f32.mrf.mxu0
  %v2990 = vadd.f32 %v2820, %v2989
  %2991 = vmatmul.bf16.gmra.mxu0 %v2780
  %v2992 = vpop.f32.mrf.mxu0
  %v2993 = vadd.f32 %v2820, %v2992
  %v2994 = vpop.f32.mrf.mxu0
  %v2995 = vadd.f32 %v2820, %v2994
  %2996 = vmatmul.bf16.gmra.mxu0 %v2782
  %v2997 = vpop.f32.mrf.mxu0
  %v2998 = vadd.f32 %v2820, %v2997
  %v2999 = vpop.f32.mrf.mxu0
  %v3000 = vadd.f32 %v2820, %v2999
  %3001 = vmatmul.bf16.gmra.mxu0 %v2784
  %v3002 = vpop.f32.mrf.mxu0
  %v3003 = vadd.f32 %v2820, %v3002
  %v3004 = vpop.f32.mrf.mxu0
  %v3005 = vadd.f32 %v2820, %v3004
  %3006 = vdwg.mxu0
  %3007 = vmatpush.bf16.msra.mxu0 %v2901
  %3008 = vmatpush.bf16.msra.mxu0 %v2900
  %3009 = vmatpush.bf16.msra.mxu0 %v2899
  %3010 = vmatpush.bf16.msra.mxu0 %v2898
  %3011 = vmatpush.bf16.msra.mxu0 %v2897
  %3012 = vmatpush.bf16.msra.mxu0 %v2896
  %3013 = vmatpush.bf16.msra.mxu0 %v2895
  %3014 = vmatpush.bf16.msra.mxu0 %v2894
  %3015 = vmatmul.bf16.gmra.mxu0 %v2755
  %v3016 = vpop.f32.mrf.mxu0
  %v3017 = vadd.f32 %v2928, %v3016
  %v3018 = vpop.f32.mrf.mxu0
  %v3019 = vadd.f32 %v2930, %v3018
  %3020 = vmatmul.bf16.gmra.mxu0 %v2757
  %v3021 = vpop.f32.mrf.mxu0
  %v3022 = vadd.f32 %v2933, %v3021
  %v3023 = vpop.f32.mrf.mxu0
  %v3024 = vadd.f32 %v2935, %v3023
  %3025 = vmatmul.bf16.gmra.mxu0 %v2759
  %v3026 = vpop.f32.mrf.mxu0
  %v3027 = vadd.f32 %v2938, %v3026
  %v3028 = vpop.f32.mrf.mxu0
  %v3029 = vadd.f32 %v2940, %v3028
  %3030 = vmatmul.bf16.gmra.mxu0 %v2761
  %v3031 = vpop.f32.mrf.mxu0
  %v3032 = vadd.f32 %v2943, %v3031
  %v3033 = vpop.f32.mrf.mxu0
  %v3034 = vadd.f32 %v2945, %v3033
  %3035 = vmatmul.bf16.gmra.mxu0 %v2763
  %v3036 = vpop.f32.mrf.mxu0
  %v3037 = vadd.f32 %v2948, %v3036
  %v3038 = vpop.f32.mrf.mxu0
  %v3039 = vadd.f32 %v2950, %v3038
  %3040 = vmatmul.bf16.gmra.mxu0 %v2765
  %v3041 = vpop.f32.mrf.mxu0
  %v3042 = vadd.f32 %v2953, %v3041
  %v3043 = vpop.f32.mrf.mxu0
  %v3044 = vadd.f32 %v2955, %v3043
  %3045 = vmatmul.bf16.gmra.mxu0 %v2767
  %v3046 = vpop.f32.mrf.mxu0
  %v3047 = vadd.f32 %v2958, %v3046
  %v3048 = vpop.f32.mrf.mxu0
  %v3049 = vadd.f32 %v2960, %v3048
  %3050 = vmatmul.bf16.gmra.mxu0 %v2769
  %v3051 = vpop.f32.mrf.mxu0
  %v3052 = vadd.f32 %v2963, %v3051
  %v3053 = vpop.f32.mrf.mxu0
  %v3054 = vadd.f32 %v2965, %v3053
  %3055 = vmatmul.bf16.gmra.mxu0 %v2771
  %v3056 = vpop.f32.mrf.mxu0
  %v3057 = vadd.f32 %v2968, %v3056
  %v3058 = vpop.f32.mrf.mxu0
  %v3059 = vadd.f32 %v2970, %v3058
  %3060 = vmatmul.bf16.gmra.mxu0 %v2773
  %v3061 = vpop.f32.mrf.mxu0
  %v3062 = vadd.f32 %v2973, %v3061
  %v3063 = vpop.f32.mrf.mxu0
  %v3064 = vadd.f32 %v2975, %v3063
  %3065 = vmatmul.bf16.gmra.mxu0 %v2775
  %v3066 = vpop.f32.mrf.mxu0
  %v3067 = vadd.f32 %v2978, %v3066
  %v3068 = vpop.f32.mrf.mxu0
  %v3069 = vadd.f32 %v2980, %v3068
  %3070 = vmatmul.bf16.gmra.mxu0 %v2777
  %v3071 = vpop.f32.mrf.mxu0
  %v3072 = vadd.f32 %v2983, %v3071
  %v3073 = vpop.f32.mrf.mxu0
  %v3074 = vadd.f32 %v2985, %v3073
  %3075 = vmatmul.bf16.gmra.mxu0 %v2779
  %v3076 = vpop.f32.mrf.mxu0
  %v3077 = vadd.f32 %v2988, %v3076
  %v3078 = vpop.f32.mrf.mxu0
  %v3079 = vadd.f32 %v2990, %v3078
  %3080 = vmatmul.bf16.gmra.mxu0 %v2781
  %v3081 = vpop.f32.mrf.mxu0
  %v3082 = vadd.f32 %v2993, %v3081
  %v3083 = vpop.f32.mrf.mxu0
  %v3084 = vadd.f32 %v2995, %v3083
  %3085 = vmatmul.bf16.gmra.mxu0 %v2783
  %v3086 = vpop.f32.mrf.mxu0
  %v3087 = vadd.f32 %v2998, %v3086
  %v3088 = vpop.f32.mrf.mxu0
  %v3089 = vadd.f32 %v3000, %v3088
  %3090 = vmatmul.bf16.gmra.mxu0 %v2785
  %v3091 = vpop.f32.mrf.mxu0
  %v3092 = vadd.f32 %v3003, %v3091
  %v3093 = vpop.f32.mrf.mxu0
  %v3094 = vadd.f32 %v3005, %v3093
  %3095 = vdwg.mxu0
  %vm3096 = vcmask 64512
  %3097 = vst.msk [vmem:[%s9] sm:$0xff] %vm3096, %v3017
  %3098 = vst.msk [vmem:[%s9 + $0x8] sm:$0xff] %vm3096, %v3019
  %3099 = vst.msk [vmem:[%s9 + $0x10] sm:$0xff] %vm3096, %v3022
  %3100 = vst.msk [vmem:[%s9 + $0x18] sm:$0xff] %vm3096, %v3024
  %3101 = vst.msk [vmem:[%s9 + $0x20] sm:$0xff] %vm3096, %v3027
  %3102 = vst.msk [vmem:[%s9 + $0x28] sm:$0xff] %vm3096, %v3029
  %3103 = vst.msk [vmem:[%s9 + $0x30] sm:$0xff] %vm3096, %v3032
  %3104 = vst.msk [vmem:[%s9 + $0x38] sm:$0xff] %vm3096, %v3034
  %3105 = vst.msk [vmem:[%s9 + $0x40] sm:$0xff] %vm3096, %v3037
  %3106 = vst.msk [vmem:[%s9 + $0x48] sm:$0xff] %vm3096, %v3039
  %3107 = vst.msk [vmem:[%s9 + $0x50] sm:$0xff] %vm3096, %v3042
  %3108 = vst.msk [vmem:[%s9 + $0x58] sm:$0xff] %vm3096, %v3044
  %3109 = vst.msk [vmem:[%s9 + $0x60] sm:$0xff] %vm3096, %v3047
  %3110 = vst.msk [vmem:[%s9 + $0x68] sm:$0xff] %vm3096, %v3049
  %3111 = vst.msk [vmem:[%s9 + $0x70] sm:$0xff] %vm3096, %v3052
  %3112 = vst.msk [vmem:[%s9 + $0x78] sm:$0xff] %vm3096, %v3054
  %3113 = vst.msk [vmem:[%s9 + $0x80] sm:$0xff] %vm3096, %v3057
  %3114 = vst.msk [vmem:[%s9 + $0x88] sm:$0xff] %vm3096, %v3059
  %3115 = vst.msk [vmem:[%s9 + $0x90] sm:$0xff] %vm3096, %v3062
  %3116 = vst.msk [vmem:[%s9 + $0x98] sm:$0xff] %vm3096, %v3064
  %3117 = vst.msk [vmem:[%s9 + $0xa0] sm:$0xff] %vm3096, %v3067
  %3118 = vst.msk [vmem:[%s9 + $0xa8] sm:$0xff] %vm3096, %v3069
  %3119 = vst.msk [vmem:[%s9 + $0xb0] sm:$0xff] %vm3096, %v3072
  %3120 = vst.msk [vmem:[%s9 + $0xb8] sm:$0xff] %vm3096, %v3074
  %3121 = vst.msk [vmem:[%s9 + $0xc0] sm:$0xff] %vm3096, %v3077
  %3122 = vst.msk [vmem:[%s9 + $0xc8] sm:$0xff] %vm3096, %v3079
  %3123 = vst.msk [vmem:[%s9 + $0xd0] sm:$0xff] %vm3096, %v3082
  %3124 = vst.msk [vmem:[%s9 + $0xd8] sm:$0xff] %vm3096, %v3084
  %3125 = vst.msk [vmem:[%s9 + $0xe0] sm:$0xff] %vm3096, %v3087
  %3126 = vst.msk [vmem:[%s9 + $0xe8] sm:$0xff] %vm3096, %v3089
  %3127 = vst.msk [vmem:[%s9 + $0xf0] sm:$0xff] %vm3096, %v3092
  %3128 = vst.msk [vmem:[%s9 + $0xf8] sm:$0xff] %vm3096, %v3094
  // Predicated region
  $region38: #{mlp_forward.1} parent=0 // pred_check
    _
  $region39: #{mlp_forward.1} parent=0 // pred_check_branch
    %3130 = sbr.rel (0) target = $region41
  $region40: #{mlp_forward.1} parent=0 // pred_region
    _
  $region41: #{mlp_forward.1} parent=0 // pred_fallthru
    _
  // Predicated region
  $region42: #{mlp_forward.1} parent=0 // pred_check
    _
  $region43: #{mlp_forward.1} parent=0 // pred_check_branch
    %3132 = sbr.rel (0) target = $region45
  $region44: #{mlp_forward.1} parent=0 // pred_region
    _
  $region45: #{mlp_forward.1} parent=0 // pred_fallthru
    _

</llo_original>
